<compile_context>
chip_gen: v6e
topology: v6e:2x2x1
jax: 0.10.0
libtpu: 0.0.40
codegen_flags: <defaults>
</compile_context>

<pallas_src>
import jax
import jax.numpy as jnp
from jax.experimental import pallas as pl
from jax.experimental.pallas import tpu as pltpu

_EPS = 1e-5


def _pad128(n):
    return ((n + 127) // 128) * 128


def init_params(key, inp_dim, hidden_dim, out_dim):
    """Synthetic PyTorch-equivalent params: list of (W(in,out), b, gamma, beta).
    gamma/beta are None for the final Linear (no BN after it)."""
    dims = [(inp_dim, hidden_dim), (hidden_dim, hidden_dim),
            (hidden_dim, hidden_dim), (hidden_dim, 256), (256, out_dim)]
    raw = []
    for i, (din, dout) in enumerate(dims):
        key, kw, kb, kg, kbe = jax.random.split(key, 5)
        s = 1.0 / jnp.sqrt(jnp.float32(din))
        w = jax.random.uniform(kw, (din, dout), jnp.float32, -s, s)
        b = jax.random.uniform(kb, (1, dout), jnp.float32, -s, s)
        if i < 4:
            g = 1.0 + 0.1 * jax.random.normal(kg, (1, dout), jnp.float32)
            be = 0.1 * jax.random.normal(kbe, (1, dout), jnp.float32)
        else:
            g = be = None
        raw.append((w, b, g, be))
    return raw


def pack_params(raw):
    """Pad feature dims to 128-multiples, cast weights to bf16.
    Returns (w123, w4, w5, pk):
      w123 : (3, H_PAD, H_PAD) bf16   -- stacked layer-1/2/3 weights
      w4   : (H_PAD, D4_PAD)   bf16
      w5   : (D4_PAD, OUT_PAD) bf16
      pk   : (3, PACK_W)       f32    -- row0 gamma, row1 beta (4 BN layers concatenated,
                                         zero-padded), row2 final bias b5 (zero-padded).
    Biases of layers 1-4 are intentionally dropped (exactly cancelled by training-mode BN)."""
    in_pad = _pad128(raw[0][0].shape[0])
    h_pad = _pad128(raw[0][0].shape[1])
    if in_pad > h_pad:
        raise NotImplementedError(
            "w1/w2/w3 stacking needs pad(inp_dim) <= pad(hidden_dim)")
    ws, gs, bes = [], [], []
    b_last = None
    for i, (w, b, g, be) in enumerate(raw):
        din, dout = w.shape
        dp, op = _pad128(din), _pad128(dout)
        if i == 0:
            dp = h_pad  # share the contraction pad with layers 2/3 so they stack
        wp = jnp.zeros((dp, op), jnp.float32).at[:din, :dout].set(w).astype(jnp.bfloat16)
        ws.append(wp)
        if g is not None:
            gs.append(jnp.zeros((1, op), jnp.float32).at[:, :dout].set(g))
            bes.append(jnp.zeros((1, op), jnp.float32).at[:, :dout].set(be))
        else:
            b_last = jnp.zeros((1, op), jnp.float32).at[:, :dout].set(b)

    w123 = jnp.stack(ws[:3], axis=0)                 # (3, H_PAD, H_PAD) bf16
    gcat = jnp.concatenate(gs, axis=1)               # (1, sum padded douts)
    becat = jnp.concatenate(bes, axis=1)
    pack_w = max(gcat.shape[1], b_last.shape[1])

    def row(r):
        return jnp.zeros((1, pack_w), jnp.float32).at[:, :r.shape[1]].set(r)

    pk = jnp.concatenate([row(gcat), row(becat), row(b_last)], axis=0)  # (3, pack_w)
    return (w123, ws[3], ws[4], pk)


def mlp_model_planner_pallas(x, packed, inp_dim, out_dim):
    w123, w4, w5, pk = packed
    B = x.shape[0]
    KPAD = w123.shape[1]      # layer-1 contraction dim (== H_PAD, x padded to this)
    H_PAD = w123.shape[2]
    D4 = w4.shape[1]
    OUT_PAD = w5.shape[1]
    douts = (H_PAD, H_PAD, H_PAD, D4)
    offs = (0, H_PAD, 2 * H_PAD, 3 * H_PAD)
    inv_b = 1.0 / float(B)

    def kernel(x_ref, w123_ref, w4_ref, w5_ref, pk_ref, out_ref):
        gb = pk_ref[...]                      # (3, PACK_W) f32 -- loaded once, sliced in-register

        def lin_bn_relu(h, w, off, dout):
            # Linear (no bias: cancelled by training-mode BN). bf16 operands, f32 MXU accum.
            y = jnp.dot(h, w, preferred_element_type=jnp.float32)
            # One-pass training-mode BN stats, folded into a single scale/shift FMA.
            s1 = jnp.sum(y, axis=0, keepdims=True)
            s2 = jnp.sum(y * y, axis=0, keepdims=True)
            mu = s1 * inv_b
            var = jnp.maximum(s2 * inv_b - mu * mu, 0.0)
            g = gb[0:1, off:off + dout]
            be = gb[1:2, off:off + dout]
            scale = g * jax.lax.rsqrt(var + _EPS)   # rsqrt -> EUP slot
            shift = be - mu * scale
            return jnp.maximum(y * scale + shift, 0.0).astype(jnp.bfloat16)

        h = x_ref[...]
        h = lin_bn_relu(h, w123_ref[0], offs[0], douts[0])
        h = lin_bn_relu(h, w123_ref[1], offs[1], douts[1])
        h = lin_bn_relu(h, w123_ref[2], offs[2], douts[2])
        h = lin_bn_relu(h, w4_ref[...], offs[3], douts[3])
        # Final Linear keeps its bias (row 2 of the pack); lane-dense (B, OUT_PAD) store.
        out_ref[...] = (jnp.dot(h, w5_ref[...], preferred_element_type=jnp.float32)
                        + gb[2:3, :OUT_PAD])

    xp = jnp.pad(x, ((0, 0), (0, KPAD - inp_dim))).astype(jnp.bfloat16)
    vmem = pl.BlockSpec(memory_space=pltpu.MemorySpace.VMEM)
    out_pad = pl.pallas_call(
        kernel,
        out_shape=jax.ShapeDtypeStruct((B, OUT_PAD), jnp.float32),
        in_specs=[vmem] * 5,
        out_specs=vmem,
    )(xp, w123, w4, w5, pk)
    return out_pad[:, :out_dim]


def reference_mixed(x, packed, inp_dim, out_dim):
    """Plain-JAX mirror of the kernel's exact mixed-precision math (tight check)."""
    w123, w4, w5, pk = packed
    KPAD = w123.shape[1]
    H_PAD = w123.shape[2]
    OUT_PAD = w5.shape[1]
    B = x.shape[0]
    inv_b = 1.0 / float(B)
    ws = [w123[0], w123[1], w123[2], w4]
    douts = [H_PAD, H_PAD, H_PAD, w4.shape[1]]
    offs = [0, H_PAD, 2 * H_PAD, 3 * H_PAD]
    h = jnp.pad(x, ((0, 0), (0, KPAD - inp_dim))).astype(jnp.bfloat16)
    for w, off, dout in zip(ws, offs, douts):
        y = jnp.dot(h, w, preferred_element_type=jnp.float32)
        mu = jnp.sum(y, axis=0, keepdims=True) * inv_b
        var = jnp.maximum(jnp.sum(y * y, axis=0, keepdims=True) * inv_b - mu * mu, 0.0)
        g = pk[0:1, off:off + dout]
        be = pk[1:2, off:off + dout]
        scale = g * jax.lax.rsqrt(var + _EPS)
        h = jnp.maximum(y * scale + (be - mu * scale), 0.0).astype(jnp.bfloat16)
    out = jnp.dot(h, w5, preferred_element_type=jnp.float32) + pk[2:3, :OUT_PAD]
    return out[:, :out_dim]


def reference_f32(x, raw):
    """Full f32 reference of the original PyTorch module (with all Linear biases and
    the textbook two-pass BN formula) -- loose check bounding bf16 quantization drift."""
    h = x
    for (w, b, g, be) in raw:
        y = h @ w + b
        if g is not None:
            mu = jnp.mean(y, axis=0, keepdims=True)
            var = jnp.var(y, axis=0, keepdims=True)
            y = (y - mu) / jnp.sqrt(var + _EPS) * g + be
            y = jnp.maximum(y, 0.0)
        h = y
    return h


if __name__ == "__main__":
    # B=128 = one full MXU LHS tile (review: effective batch is the biggest lever);
    # feature dims stay at the module's small sizes.
    B, inp_dim, hidden_dim, out_dim = 128, 16, 32, 6

    key = jax.random.PRNGKey(0)
    kx, kp = jax.random.split(key)
    x = jax.random.normal(kx, (B, inp_dim), jnp.float32)
    raw = init_params(kp, inp_dim, hidden_dim, out_dim)
    packed = pack_params(raw)

    out = mlp_model_planner_pallas(x, packed, inp_dim, out_dim)
    out = jax.block_until_ready(out)
    assert out.shape == (B, out_dim)

    # Tight check: same mixed-precision scheme (bf16 dot operands, f32 accum, one-pass BN
    # stats) in plain JAX.
    ref_m = reference_mixed(x, packed, inp_dim, out_dim)
    assert jnp.allclose(out, ref_m, atol=2e-4, rtol=2e-4)

    # Loose check: original f32 module math (incl. the cancelled biases, two-pass var);
    # the only differences are bf16 rounding of matmul operands + one-pass variance.
    ref_f = reference_f32(x, raw)
    assert jnp.max(jnp.abs(out - ref_f)) < 0.2

    print("KERNEL_OK")
</pallas_src>

<mosaic_0001>
module attributes {stable_mosaic.version = 11 : i64} {
  func.func @kernel(%arg0: memref<128x128xbf16, #tpu.memory_space<vmem>>, %arg1: memref<3x128x128xbf16, #tpu.memory_space<vmem>>, %arg2: memref<128x256xbf16, #tpu.memory_space<vmem>>, %arg3: memref<256x128xbf16, #tpu.memory_space<vmem>>, %arg4: memref<3x640xf32, #tpu.memory_space<vmem>>, %arg5: memref<128x128xf32, #tpu.memory_space<vmem>>) attributes {dimension_semantics = [], scalar_prefetch = 0 : i64, scratch_operands = 0 : i64, tpu.core_type = #tpu.core_type<tc>} {
    %c0 = arith.constant 0 : index
    %c0_0 = arith.constant 0 : index
    %0 = vector.load %arg4[%c0, %c0_0] : memref<3x640xf32, #tpu.memory_space<vmem>>, vector<3x640xf32>
    %c0_1 = arith.constant 0 : index
    %c0_2 = arith.constant 0 : index
    %1 = vector.load %arg0[%c0_1, %c0_2] : memref<128x128xbf16, #tpu.memory_space<vmem>>, vector<128x128xbf16>
    %c0_3 = arith.constant 0 : index
    %c0_4 = arith.constant 0 : index
    %c0_5 = arith.constant 0 : index
    %2 = vector.load %arg1[%c0_3, %c0_4, %c0_5] : memref<3x128x128xbf16, #tpu.memory_space<vmem>>, vector<1x128x128xbf16>
    %3 = vector.shape_cast %2 : vector<1x128x128xbf16> to vector<128x128xbf16>
    %cst = arith.constant dense<0.000000e+00> : vector<128x128xf32>
    %4 = tpu.matmul %1, %3, %cst {dimension_numbers = #tpu.dot_dimension_numbers<[1], [0], [0], [1], [0, 0, 1, 1], [], []>} : vector<128x128xbf16>, vector<128x128xbf16>, vector<128x128xf32> -> vector<128x128xf32>
    %cst_6 = arith.constant dense<0.000000e+00> : vector<128xf32>
    %5 = vector.multi_reduction <add>, %4, %cst_6 [0] : vector<128x128xf32> to vector<128xf32>
    %6 = vector.shape_cast %5 : vector<128xf32> to vector<1x128xf32>
    %7 = arith.mulf %4, %4 : vector<128x128xf32>
    %cst_7 = arith.constant dense<0.000000e+00> : vector<128xf32>
    %8 = vector.multi_reduction <add>, %7, %cst_7 [0] : vector<128x128xf32> to vector<128xf32>
    %9 = vector.shape_cast %8 : vector<128xf32> to vector<1x128xf32>
    %cst_8 = arith.constant 7.812500e-03 : f32
    %10 = vector.broadcast %cst_8 : f32 to vector<1x128xf32>
    %11 = arith.mulf %6, %10 : vector<1x128xf32>
    %cst_9 = arith.constant 7.812500e-03 : f32
    %12 = vector.broadcast %cst_9 : f32 to vector<1x128xf32>
    %13 = arith.mulf %9, %12 : vector<1x128xf32>
    %14 = arith.mulf %11, %11 : vector<1x128xf32>
    %15 = arith.subf %13, %14 : vector<1x128xf32>
    %cst_10 = arith.constant 0.000000e+00 : f32
    %16 = vector.broadcast %cst_10 : f32 to vector<1x128xf32>
    %17 = arith.maximumf %15, %16 : vector<1x128xf32>
    %18 = vector.extract_strided_slice %0 {offsets = [0, 0], sizes = [1, 128], strides = [1, 1]} : vector<3x640xf32> to vector<1x128xf32>
    %19 = vector.extract_strided_slice %0 {offsets = [1, 0], sizes = [1, 128], strides = [1, 1]} : vector<3x640xf32> to vector<1x128xf32>
    %cst_11 = arith.constant 9.99999974E-6 : f32
    %20 = vector.broadcast %cst_11 : f32 to vector<1x128xf32>
    %21 = arith.addf %17, %20 : vector<1x128xf32>
    %22 = math.rsqrt %21 : vector<1x128xf32>
    %23 = arith.mulf %18, %22 : vector<1x128xf32>
    %24 = arith.mulf %11, %23 : vector<1x128xf32>
    %25 = arith.subf %19, %24 : vector<1x128xf32>
    %26 = vector.broadcast %23 : vector<1x128xf32> to vector<128x128xf32>
    %27 = arith.mulf %4, %26 : vector<128x128xf32>
    %28 = vector.broadcast %25 : vector<1x128xf32> to vector<128x128xf32>
    %29 = arith.addf %27, %28 : vector<128x128xf32>
    %cst_12 = arith.constant 0.000000e+00 : f32
    %30 = vector.broadcast %cst_12 : f32 to vector<128x128xf32>
    %31 = arith.maximumf %29, %30 : vector<128x128xf32>
    %32 = arith.truncf %31 : vector<128x128xf32> to vector<128x128xbf16>
    %c1 = arith.constant 1 : index
    %c0_13 = arith.constant 0 : index
    %c0_14 = arith.constant 0 : index
    %33 = vector.load %arg1[%c1, %c0_13, %c0_14] : memref<3x128x128xbf16, #tpu.memory_space<vmem>>, vector<1x128x128xbf16>
    %34 = vector.shape_cast %33 : vector<1x128x128xbf16> to vector<128x128xbf16>
    %cst_15 = arith.constant dense<0.000000e+00> : vector<128x128xf32>
    %35 = tpu.matmul %32, %34, %cst_15 {dimension_numbers = #tpu.dot_dimension_numbers<[1], [0], [0], [1], [0, 0, 1, 1], [], []>} : vector<128x128xbf16>, vector<128x128xbf16>, vector<128x128xf32> -> vector<128x128xf32>
    %cst_16 = arith.constant dense<0.000000e+00> : vector<128xf32>
    %36 = vector.multi_reduction <add>, %35, %cst_16 [0] : vector<128x128xf32> to vector<128xf32>
    %37 = vector.shape_cast %36 : vector<128xf32> to vector<1x128xf32>
    %38 = arith.mulf %35, %35 : vector<128x128xf32>
    %cst_17 = arith.constant dense<0.000000e+00> : vector<128xf32>
    %39 = vector.multi_reduction <add>, %38, %cst_17 [0] : vector<128x128xf32> to vector<128xf32>
    %40 = vector.shape_cast %39 : vector<128xf32> to vector<1x128xf32>
    %cst_18 = arith.constant 7.812500e-03 : f32
    %41 = vector.broadcast %cst_18 : f32 to vector<1x128xf32>
    %42 = arith.mulf %37, %41 : vector<1x128xf32>
    %cst_19 = arith.constant 7.812500e-03 : f32
    %43 = vector.broadcast %cst_19 : f32 to vector<1x128xf32>
    %44 = arith.mulf %40, %43 : vector<1x128xf32>
    %45 = arith.mulf %42, %42 : vector<1x128xf32>
    %46 = arith.subf %44, %45 : vector<1x128xf32>
    %cst_20 = arith.constant 0.000000e+00 : f32
    %47 = vector.broadcast %cst_20 : f32 to vector<1x128xf32>
    %48 = arith.maximumf %46, %47 : vector<1x128xf32>
    %49 = vector.extract_strided_slice %0 {offsets = [0, 128], sizes = [1, 128], strides = [1, 1]} : vector<3x640xf32> to vector<1x128xf32>
    %50 = vector.extract_strided_slice %0 {offsets = [1, 128], sizes = [1, 128], strides = [1, 1]} : vector<3x640xf32> to vector<1x128xf32>
    %cst_21 = arith.constant 9.99999974E-6 : f32
    %51 = vector.broadcast %cst_21 : f32 to vector<1x128xf32>
    %52 = arith.addf %48, %51 : vector<1x128xf32>
    %53 = math.rsqrt %52 : vector<1x128xf32>
    %54 = arith.mulf %49, %53 : vector<1x128xf32>
    %55 = arith.mulf %42, %54 : vector<1x128xf32>
    %56 = arith.subf %50, %55 : vector<1x128xf32>
    %57 = vector.broadcast %54 : vector<1x128xf32> to vector<128x128xf32>
    %58 = arith.mulf %35, %57 : vector<128x128xf32>
    %59 = vector.broadcast %56 : vector<1x128xf32> to vector<128x128xf32>
    %60 = arith.addf %58, %59 : vector<128x128xf32>
    %cst_22 = arith.constant 0.000000e+00 : f32
    %61 = vector.broadcast %cst_22 : f32 to vector<128x128xf32>
    %62 = arith.maximumf %60, %61 : vector<128x128xf32>
    %63 = arith.truncf %62 : vector<128x128xf32> to vector<128x128xbf16>
    %c2 = arith.constant 2 : index
    %c0_23 = arith.constant 0 : index
    %c0_24 = arith.constant 0 : index
    %64 = vector.load %arg1[%c2, %c0_23, %c0_24] : memref<3x128x128xbf16, #tpu.memory_space<vmem>>, vector<1x128x128xbf16>
    %65 = vector.shape_cast %64 : vector<1x128x128xbf16> to vector<128x128xbf16>
    %cst_25 = arith.constant dense<0.000000e+00> : vector<128x128xf32>
    %66 = tpu.matmul %63, %65, %cst_25 {dimension_numbers = #tpu.dot_dimension_numbers<[1], [0], [0], [1], [0, 0, 1, 1], [], []>} : vector<128x128xbf16>, vector<128x128xbf16>, vector<128x128xf32> -> vector<128x128xf32>
    %cst_26 = arith.constant dense<0.000000e+00> : vector<128xf32>
    %67 = vector.multi_reduction <add>, %66, %cst_26 [0] : vector<128x128xf32> to vector<128xf32>
    %68 = vector.shape_cast %67 : vector<128xf32> to vector<1x128xf32>
    %69 = arith.mulf %66, %66 : vector<128x128xf32>
    %cst_27 = arith.constant dense<0.000000e+00> : vector<128xf32>
    %70 = vector.multi_reduction <add>, %69, %cst_27 [0] : vector<128x128xf32> to vector<128xf32>
    %71 = vector.shape_cast %70 : vector<128xf32> to vector<1x128xf32>
    %cst_28 = arith.constant 7.812500e-03 : f32
    %72 = vector.broadcast %cst_28 : f32 to vector<1x128xf32>
    %73 = arith.mulf %68, %72 : vector<1x128xf32>
    %cst_29 = arith.constant 7.812500e-03 : f32
    %74 = vector.broadcast %cst_29 : f32 to vector<1x128xf32>
    %75 = arith.mulf %71, %74 : vector<1x128xf32>
    %76 = arith.mulf %73, %73 : vector<1x128xf32>
    %77 = arith.subf %75, %76 : vector<1x128xf32>
    %cst_30 = arith.constant 0.000000e+00 : f32
    %78 = vector.broadcast %cst_30 : f32 to vector<1x128xf32>
    %79 = arith.maximumf %77, %78 : vector<1x128xf32>
    %80 = vector.extract_strided_slice %0 {offsets = [0, 256], sizes = [1, 128], strides = [1, 1]} : vector<3x640xf32> to vector<1x128xf32>
    %81 = vector.extract_strided_slice %0 {offsets = [1, 256], sizes = [1, 128], strides = [1, 1]} : vector<3x640xf32> to vector<1x128xf32>
    %cst_31 = arith.constant 9.99999974E-6 : f32
    %82 = vector.broadcast %cst_31 : f32 to vector<1x128xf32>
    %83 = arith.addf %79, %82 : vector<1x128xf32>
    %84 = math.rsqrt %83 : vector<1x128xf32>
    %85 = arith.mulf %80, %84 : vector<1x128xf32>
    %86 = arith.mulf %73, %85 : vector<1x128xf32>
    %87 = arith.subf %81, %86 : vector<1x128xf32>
    %88 = vector.broadcast %85 : vector<1x128xf32> to vector<128x128xf32>
    %89 = arith.mulf %66, %88 : vector<128x128xf32>
    %90 = vector.broadcast %87 : vector<1x128xf32> to vector<128x128xf32>
    %91 = arith.addf %89, %90 : vector<128x128xf32>
    %cst_32 = arith.constant 0.000000e+00 : f32
    %92 = vector.broadcast %cst_32 : f32 to vector<128x128xf32>
    %93 = arith.maximumf %91, %92 : vector<128x128xf32>
    %94 = arith.truncf %93 : vector<128x128xf32> to vector<128x128xbf16>
    %c0_33 = arith.constant 0 : index
    %c0_34 = arith.constant 0 : index
    %95 = vector.load %arg2[%c0_33, %c0_34] : memref<128x256xbf16, #tpu.memory_space<vmem>>, vector<128x256xbf16>
    %cst_35 = arith.constant dense<0.000000e+00> : vector<128x256xf32>
    %96 = tpu.matmul %94, %95, %cst_35 {dimension_numbers = #tpu.dot_dimension_numbers<[1], [0], [0], [1], [0, 0, 1, 1], [], []>} : vector<128x128xbf16>, vector<128x256xbf16>, vector<128x256xf32> -> vector<128x256xf32>
    %cst_36 = arith.constant dense<0.000000e+00> : vector<256xf32>
    %97 = vector.multi_reduction <add>, %96, %cst_36 [0] : vector<128x256xf32> to vector<256xf32>
    %98 = vector.shape_cast %97 : vector<256xf32> to vector<1x256xf32>
    %99 = arith.mulf %96, %96 : vector<128x256xf32>
    %cst_37 = arith.constant dense<0.000000e+00> : vector<256xf32>
    %100 = vector.multi_reduction <add>, %99, %cst_37 [0] : vector<128x256xf32> to vector<256xf32>
    %101 = vector.shape_cast %100 : vector<256xf32> to vector<1x256xf32>
    %cst_38 = arith.constant 7.812500e-03 : f32
    %102 = vector.broadcast %cst_38 : f32 to vector<1x256xf32>
    %103 = arith.mulf %98, %102 : vector<1x256xf32>
    %cst_39 = arith.constant 7.812500e-03 : f32
    %104 = vector.broadcast %cst_39 : f32 to vector<1x256xf32>
    %105 = arith.mulf %101, %104 : vector<1x256xf32>
    %106 = arith.mulf %103, %103 : vector<1x256xf32>
    %107 = arith.subf %105, %106 : vector<1x256xf32>
    %cst_40 = arith.constant 0.000000e+00 : f32
    %108 = vector.broadcast %cst_40 : f32 to vector<1x256xf32>
    %109 = arith.maximumf %107, %108 : vector<1x256xf32>
    %110 = vector.extract_strided_slice %0 {offsets = [0, 384], sizes = [1, 256], strides = [1, 1]} : vector<3x640xf32> to vector<1x256xf32>
    %111 = vector.extract_strided_slice %0 {offsets = [1, 384], sizes = [1, 256], strides = [1, 1]} : vector<3x640xf32> to vector<1x256xf32>
    %cst_41 = arith.constant 9.99999974E-6 : f32
    %112 = vector.broadcast %cst_41 : f32 to vector<1x256xf32>
    %113 = arith.addf %109, %112 : vector<1x256xf32>
    %114 = math.rsqrt %113 : vector<1x256xf32>
    %115 = arith.mulf %110, %114 : vector<1x256xf32>
    %116 = arith.mulf %103, %115 : vector<1x256xf32>
    %117 = arith.subf %111, %116 : vector<1x256xf32>
    %118 = vector.broadcast %115 : vector<1x256xf32> to vector<128x256xf32>
    %119 = arith.mulf %96, %118 : vector<128x256xf32>
    %120 = vector.broadcast %117 : vector<1x256xf32> to vector<128x256xf32>
    %121 = arith.addf %119, %120 : vector<128x256xf32>
    %cst_42 = arith.constant 0.000000e+00 : f32
    %122 = vector.broadcast %cst_42 : f32 to vector<128x256xf32>
    %123 = arith.maximumf %121, %122 : vector<128x256xf32>
    %124 = arith.truncf %123 : vector<128x256xf32> to vector<128x256xbf16>
    %c0_43 = arith.constant 0 : index
    %c0_44 = arith.constant 0 : index
    %125 = vector.load %arg3[%c0_43, %c0_44] : memref<256x128xbf16, #tpu.memory_space<vmem>>, vector<256x128xbf16>
    %cst_45 = arith.constant dense<0.000000e+00> : vector<128x128xf32>
    %126 = tpu.matmul %124, %125, %cst_45 {dimension_numbers = #tpu.dot_dimension_numbers<[1], [0], [0], [1], [0, 0, 1, 1], [], []>} : vector<128x256xbf16>, vector<256x128xbf16>, vector<128x128xf32> -> vector<128x128xf32>
    %127 = vector.extract_strided_slice %0 {offsets = [2, 0], sizes = [1, 128], strides = [1, 1]} : vector<3x640xf32> to vector<1x128xf32>
    %128 = vector.broadcast %127 : vector<1x128xf32> to vector<128x128xf32>
    %129 = arith.addf %126, %128 : vector<128x128xf32>
    %c0_46 = arith.constant 0 : index
    %c0_47 = arith.constant 0 : index
    %130 = vector.load %arg5[%c0_46, %c0_47] : memref<128x128xf32, #tpu.memory_space<vmem>>, vector<128x128xf32>
    tpu.vector_store %arg5[%c0_46, %c0_47], %129 {strides = array<i32>} : memref<128x128xf32, #tpu.memory_space<vmem>>, vector<128x128xf32>,
    return
  }
}

</mosaic_0001>

<llo_original>
// kernel: tpu_custom_call.1
$region0: #{tpu_custom_call.1}
  #allocation0 [shape = 'u32[]', space=smem, size = 0x4, offset = 0x4, fixed_abs, tag = 'smem constant byte address 0x4 - core index']
  #allocation1 [shape = 'u32[144,128]{1,0:T(1,128)}', space=vmem, size = 0x12000, scoped, tag = 'internal scratch']
  %s0 = inlined_call_operand.hbm [shape: bf16[128,128], index: 0, kind: input, shape index: {}]
  %s1 = inlined_call_operand.hbm [shape: bf16[3,128,128], index: 1, kind: input, shape index: {}]
  %s2 = inlined_call_operand.hbm [shape: bf16[128,256], index: 2, kind: input, shape index: {}]
  %s3 = inlined_call_operand.hbm [shape: bf16[256,128], index: 3, kind: input, shape index: {}]
  %s4 = inlined_call_operand.hbm [shape: f32[3,640], index: 4, kind: input, shape index: {}]
  %s5 = inlined_call_operand.hbm [shape: f32[128,128], index: 5, kind: output, shape index: {}]
  %s6 = sld [smem:[#allocation0]]
  $region50: #{tpu_custom_call.1} parent=0
    _
  %s8 = ssub.s32 1, %s6
  %s9 = scalar_select 0, %s8, %s6
  $region1: #{tpu_custom_call.1} parent=0
    #allocation2 [shape = 'u8[32768]{0}', space=vmem, size = 0x8000, scoped, tag = 'input window, operand 0, single buffered']
    #allocation3 [shape = 's32[1]{0}', space=sflag, size = 0x4, scoped, tag = 'scoped memory for tpu_custom_call.1']
    #allocation4 [shape = 's32[1]{0}', space=sflag, size = 0x4, scoped, tag = 'scoped memory for tpu_custom_call.1']
    #allocation5 [shape = 'u8[98304]{0}', space=vmem, size = 0x18000, scoped, tag = 'input window, operand 1, single buffered']
    #allocation6 [shape = 's32[1]{0}', space=sflag, size = 0x4, scoped, tag = 'scoped memory for tpu_custom_call.1']
    #allocation7 [shape = 'u8[65536]{0}', space=vmem, size = 0x10000, scoped, tag = 'input window, operand 2, single buffered']
    #allocation8 [shape = 'u8[65536]{0}', space=vmem, size = 0x10000, scoped, tag = 'input window, operand 3, single buffered']
    #allocation9 [shape = 's32[1]{0}', space=sflag, size = 0x4, scoped, tag = 'scoped memory for tpu_custom_call.1']
    #allocation10 [shape = 'u8[10240]{0}', space=vmem, size = 0x2800, scoped, tag = 'input window, operand 4, single buffered']
    #allocation11 [shape = 'u8[65536]{0}', space=vmem, size = 0x10000, scoped, tag = 'output window, operand 0, single buffered']
    %10 = vsyncpa [#allocation3], 0
    %11 = vsyncpa [#allocation6], 0
    %12 = vsyncpa [#allocation9], 0
    %13 = vsyncpa [#allocation4], 0
    // Predicated region
    $region2: #{tpu_custom_call.1} parent=1 // pred_check
      _
    $region3: #{tpu_custom_call.1} parent=1 // pred_check_branch
      %15 = sbr.rel (0) target = $region5
    $region4: #{tpu_custom_call.1} parent=1 // pred_region
      %s17 = ssub.s32 1024, 1024
      %18 = vsyncadd [#allocation3], %s17
      %s19 = sshll.u32 [#allocation2], 4
      %s20 = int_to_ptr.vmem [resolvable:$true] %s19
      %25 = dma.hbm_to_vmem [thread:$0]  %s0, 1024, %s20, [#allocation3], 64, 64, 4
    $region5: #{tpu_custom_call.1} parent=1 // pred_fallthru
      _
    // Predicated region
    $region6: #{tpu_custom_call.1} parent=1 // pred_check
      _
    $region7: #{tpu_custom_call.1} parent=1 // pred_check_branch
      %27 = sbr.rel (0) target = $region9
    $region8: #{tpu_custom_call.1} parent=1 // pred_region
      %s29 = ssub.s32 3072, 3072
      %30 = vsyncadd [#allocation6], %s29
      %s31 = sshll.u32 [#allocation5], 4
      %s32 = int_to_ptr.vmem [resolvable:$true] %s31
      %37 = dma.hbm_to_vmem [thread:$0]  %s1, 3072, %s32, [#allocation6], 64, 64, 4
    $region9: #{tpu_custom_call.1} parent=1 // pred_fallthru
      _
    // Predicated region
    $region10: #{tpu_custom_call.1} parent=1 // pred_check
      _
    $region11: #{tpu_custom_call.1} parent=1 // pred_check_branch
      %39 = sbr.rel (0) target = $region13
    $region12: #{tpu_custom_call.1} parent=1 // pred_region
      %s41 = ssub.s32 2048, 2048
      %42 = vsyncadd [#allocation6], %s41
      %s43 = sshll.u32 [#allocation7], 4
      %s44 = int_to_ptr.vmem [resolvable:$true] %s43
      %49 = dma.hbm_to_vmem [thread:$0]  %s2, 2048, %s44, [#allocation6], 128, 128, 8
    $region13: #{tpu_custom_call.1} parent=1 // pred_fallthru
      _
    // Predicated region
    $region14: #{tpu_custom_call.1} parent=1 // pred_check
      _
    $region15: #{tpu_custom_call.1} parent=1 // pred_check_branch
      %51 = sbr.rel (0) target = $region17
    $region16: #{tpu_custom_call.1} parent=1 // pred_region
      %s53 = ssub.s32 2048, 2048
      %54 = vsyncadd [#allocation9], %s53
      %s55 = sshll.u32 [#allocation8], 4
      %s56 = int_to_ptr.vmem [resolvable:$true] %s55
      %61 = dma.hbm_to_vmem [thread:$0]  %s3, 2048, %s56, [#allocation9], 64, 64, 4
    $region17: #{tpu_custom_call.1} parent=1 // pred_fallthru
      _
    // Predicated region
    $region18: #{tpu_custom_call.1} parent=1 // pred_check
      _
    $region19: #{tpu_custom_call.1} parent=1 // pred_check_branch
      %63 = sbr.rel (0) target = $region21
    $region20: #{tpu_custom_call.1} parent=1 // pred_region
      %s65 = ssub.s32 320, 320
      %66 = vsyncadd [#allocation9], %s65
      %s68 = sshll.u32 [#allocation10], 4
      %s69 = int_to_ptr.vmem [resolvable:$true] %s68
      %71 = dma.hbm_to_vmem [thread:$0]  %s4, 320, %s69, [#allocation9]
    $region21: #{tpu_custom_call.1} parent=1 // pred_fallthru
      _
    // Predicated region
    $region22: #{tpu_custom_call.1} parent=1 // pred_check
      _
    $region23: #{tpu_custom_call.1} parent=1 // pred_check_branch
      %73 = sbr.rel (0) target = $region25
    $region24: #{tpu_custom_call.1} parent=1 // pred_region
      %74 = dma.done [#allocation3], 1024
    $region25: #{tpu_custom_call.1} parent=1 // pred_fallthru
      _
    // Predicated region
    $region26: #{tpu_custom_call.1} parent=1 // pred_check
      _
    $region27: #{tpu_custom_call.1} parent=1 // pred_check_branch
      %76 = sbr.rel (0) target = $region29
    $region28: #{tpu_custom_call.1} parent=1 // pred_region
      %77 = dma.done [#allocation6], 3072
    $region29: #{tpu_custom_call.1} parent=1 // pred_fallthru
      _
    // Predicated region
    $region30: #{tpu_custom_call.1} parent=1 // pred_check
      _
    $region31: #{tpu_custom_call.1} parent=1 // pred_check_branch
      %79 = sbr.rel (0) target = $region33
    $region32: #{tpu_custom_call.1} parent=1 // pred_region
      %80 = dma.done [#allocation6], 2048
    $region33: #{tpu_custom_call.1} parent=1 // pred_fallthru
      _
    // Predicated region
    $region34: #{tpu_custom_call.1} parent=1 // pred_check
      _
    $region35: #{tpu_custom_call.1} parent=1 // pred_check_branch
      %82 = sbr.rel (0) target = $region37
    $region36: #{tpu_custom_call.1} parent=1 // pred_region
      %83 = dma.done [#allocation9], 2048
    $region37: #{tpu_custom_call.1} parent=1 // pred_fallthru
      _
    // Predicated region
    $region38: #{tpu_custom_call.1} parent=1 // pred_check
      _
    $region39: #{tpu_custom_call.1} parent=1 // pred_check_branch
      %85 = sbr.rel (0) target = $region41
    $region40: #{tpu_custom_call.1} parent=1 // pred_region
      %86 = dma.done [#allocation9], 320
    $region41: #{tpu_custom_call.1} parent=1 // pred_fallthru
      _
    %v88 = vld [vmem:[#allocation10] sm:$0x77]
    %v89 = vld [vmem:[#allocation10 + $0x8] sm:$0x77]
    %v90 = vld [vmem:[#allocation10 + $0x10] sm:$0x7]
    %v91 = vld [vmem:[#allocation2] sm:$0xf]
    %v92 = vld [vmem:[#allocation2 + $0x4] sm:$0xf]
    %v93 = vld [vmem:[#allocation2 + $0x8] sm:$0xf]
    %v94 = vld [vmem:[#allocation2 + $0xc] sm:$0xf]
    %v95 = vld [vmem:[#allocation2 + $0x10] sm:$0xf]
    %v96 = vld [vmem:[#allocation2 + $0x14] sm:$0xf]
    %v97 = vld [vmem:[#allocation2 + $0x18] sm:$0xf]
    %v98 = vld [vmem:[#allocation2 + $0x1c] sm:$0xf]
    %v99 = vld [vmem:[#allocation2 + $0x20] sm:$0xf]
    %v100 = vld [vmem:[#allocation2 + $0x24] sm:$0xf]
    %v101 = vld [vmem:[#allocation2 + $0x28] sm:$0xf]
    %v102 = vld [vmem:[#allocation2 + $0x2c] sm:$0xf]
    %v103 = vld [vmem:[#allocation2 + $0x30] sm:$0xf]
    %v104 = vld [vmem:[#allocation2 + $0x34] sm:$0xf]
    %v105 = vld [vmem:[#allocation2 + $0x38] sm:$0xf]
    %v106 = vld [vmem:[#allocation2 + $0x3c] sm:$0xf]
    %v107 = vld [vmem:[#allocation5] sm:$0xf]
    %v108 = vld [vmem:[#allocation5 + $0x4] sm:$0xf]
    %v109 = vld [vmem:[#allocation5 + $0x8] sm:$0xf]
    %v110 = vld [vmem:[#allocation5 + $0xc] sm:$0xf]
    %v111 = vld [vmem:[#allocation5 + $0x10] sm:$0xf]
    %v112 = vld [vmem:[#allocation5 + $0x14] sm:$0xf]
    %v113 = vld [vmem:[#allocation5 + $0x18] sm:$0xf]
    %v114 = vld [vmem:[#allocation5 + $0x1c] sm:$0xf]
    %v115 = vld [vmem:[#allocation5 + $0x20] sm:$0xf]
    %v116 = vld [vmem:[#allocation5 + $0x24] sm:$0xf]
    %v117 = vld [vmem:[#allocation5 + $0x28] sm:$0xf]
    %v118 = vld [vmem:[#allocation5 + $0x2c] sm:$0xf]
    %v119 = vld [vmem:[#allocation5 + $0x30] sm:$0xf]
    %v120 = vld [vmem:[#allocation5 + $0x34] sm:$0xf]
    %v121 = vld [vmem:[#allocation5 + $0x38] sm:$0xf]
    %v122 = vld [vmem:[#allocation5 + $0x3c] sm:$0xf]
    %v139 = vunpack.c.l.b16 %v91
    %v140 = vunpack.c.l.b16 %v92
    %v141 = vunpack.c.l.b16 %v93
    %v142 = vunpack.c.l.b16 %v94
    %v143 = vunpack.c.l.b16 %v95
    %v144 = vunpack.c.l.b16 %v96
    %v145 = vunpack.c.l.b16 %v97
    %v146 = vunpack.c.l.b16 %v98
    %v147 = vunpack.c.l.b16 %v99
    %v148 = vunpack.c.l.b16 %v100
    %v149 = vunpack.c.l.b16 %v101
    %v150 = vunpack.c.l.b16 %v102
    %v151 = vunpack.c.l.b16 %v103
    %v152 = vunpack.c.l.b16 %v104
    %v153 = vunpack.c.l.b16 %v105
    %v154 = vunpack.c.l.b16 %v106
    %v155 = vpack.c.b16 %v140, %v139
    %v156 = vpack.c.b16 %v142, %v141
    %v157 = vpack.c.b16 %v144, %v143
    %v158 = vpack.c.b16 %v146, %v145
    %v159 = vpack.c.b16 %v148, %v147
    %v160 = vpack.c.b16 %v150, %v149
    %v161 = vpack.c.b16 %v152, %v151
    %v162 = vpack.c.b16 %v154, %v153
    %v187 = vunpack.c.l.b16 %v107
    %v188 = vunpack.c.l.b16 %v108
    %v189 = vunpack.c.l.b16 %v109
    %v190 = vunpack.c.l.b16 %v110
    %v191 = vunpack.c.l.b16 %v111
    %v192 = vunpack.c.l.b16 %v112
    %v193 = vunpack.c.l.b16 %v113
    %v194 = vunpack.c.l.b16 %v114
    %v195 = vunpack.c.l.b16 %v115
    %v196 = vunpack.c.l.b16 %v116
    %v197 = vunpack.c.l.b16 %v117
    %v198 = vunpack.c.l.b16 %v118
    %v199 = vunpack.c.l.b16 %v119
    %v200 = vunpack.c.l.b16 %v120
    %v201 = vunpack.c.l.b16 %v121
    %v202 = vunpack.c.l.b16 %v122
    %v203 = vpack.c.b16 %v188, %v187
    %v204 = vpack.c.b16 %v190, %v189
    %v205 = vpack.c.b16 %v192, %v191
    %v206 = vpack.c.b16 %v194, %v193
    %v207 = vpack.c.b16 %v196, %v195
    %v208 = vpack.c.b16 %v198, %v197
    %v209 = vpack.c.b16 %v200, %v199
    %v210 = vpack.c.b16 %v202, %v201
    %219 = vmatprep.subr.bf16.mxu0 0
    %220 = vmatpush1.bf16.msra.mxu0 %v210
    %221 = vmatprep.subr.bf16.mxu0 0
    %222 = vmatpush1.bf16.msra.mxu0 %v209
    %223 = vmatprep.subr.bf16.mxu0 0
    %224 = vmatpush1.bf16.msra.mxu0 %v208
    %225 = vmatprep.subr.bf16.mxu0 0
    %226 = vmatpush1.bf16.msra.mxu0 %v207
    %227 = vmatprep.subr.bf16.mxu0 0
    %228 = vmatpush1.bf16.msra.mxu0 %v206
    %229 = vmatprep.subr.bf16.mxu0 0
    %230 = vmatpush1.bf16.msra.mxu0 %v205
    %231 = vmatprep.subr.bf16.mxu0 0
    %232 = vmatpush1.bf16.msra.mxu0 %v204
    %233 = vmatprep.subr.bf16.mxu0 0
    %234 = vmatpush1.bf16.msra.mxu0 %v203
    %235 = vmatprep.subr.bf16.mxu0 0
    %236 = vmatpush2.bf16.msra.mxu0 0
    %237 = vmatprep.subr.bf16.mxu0 0
    %238 = vmatpush2.bf16.msra.mxu0 0
    %239 = vmatprep.subr.bf16.mxu0 0
    %240 = vmatpush2.bf16.msra.mxu0 0
    %241 = vmatprep.subr.bf16.mxu0 0
    %242 = vmatpush2.bf16.msra.mxu0 0
    %243 = vmatprep.subr.bf16.mxu0 0
    %244 = vmatpush2.bf16.msra.mxu0 0
    %245 = vmatprep.subr.bf16.mxu0 0
    %246 = vmatpush2.bf16.msra.mxu0 0
    %247 = vmatprep.subr.bf16.mxu0 0
    %248 = vmatpush2.bf16.msra.mxu0 0
    %249 = vmatprep.subr.bf16.mxu0 0
    %250 = vmatpush2.bf16.msra.mxu0 0
    %251 = vmatprep.mubr.bf16.mxu0 0
    %252 = vmatmul.mubr.bf16.gmra.mxu0 %v155
    %v253 = vpop.f32.mrf.mxu0
    %v254 = vadd.f32 0.0, %v253
    %v255 = vpop.f32.mrf.mxu0
    %v256 = vpop.f32.mrf.mxu0
    %v257 = vadd.f32 0.0, %v256
    %v258 = vpop.f32.mrf.mxu0
    %259 = vmatprep.mubr.bf16.mxu0 0
    %260 = vmatmul.mubr.bf16.gmra.mxu0 %v156
    %v261 = vpop.f32.mrf.mxu0
    %v262 = vadd.f32 0.0, %v261
    %v263 = vpop.f32.mrf.mxu0
    %v264 = vpop.f32.mrf.mxu0
    %v265 = vadd.f32 0.0, %v264
    %v266 = vpop.f32.mrf.mxu0
    %267 = vmatprep.mubr.bf16.mxu0 0
    %268 = vmatmul.mubr.bf16.gmra.mxu0 %v157
    %v269 = vpop.f32.mrf.mxu0
    %v270 = vadd.f32 0.0, %v269
    %v271 = vpop.f32.mrf.mxu0
    %v272 = vpop.f32.mrf.mxu0
    %v273 = vadd.f32 0.0, %v272
    %v274 = vpop.f32.mrf.mxu0
    %275 = vmatprep.mubr.bf16.mxu0 0
    %276 = vmatmul.mubr.bf16.gmra.mxu0 %v158
    %v277 = vpop.f32.mrf.mxu0
    %v278 = vadd.f32 0.0, %v277
    %v279 = vpop.f32.mrf.mxu0
    %v280 = vpop.f32.mrf.mxu0
    %v281 = vadd.f32 0.0, %v280
    %v282 = vpop.f32.mrf.mxu0
    %283 = vmatprep.mubr.bf16.mxu0 0
    %284 = vmatmul.mubr.bf16.gmra.mxu0 %v159
    %v285 = vpop.f32.mrf.mxu0
    %v286 = vadd.f32 0.0, %v285
    %v287 = vpop.f32.mrf.mxu0
    %v288 = vpop.f32.mrf.mxu0
    %v289 = vadd.f32 0.0, %v288
    %v290 = vpop.f32.mrf.mxu0
    %291 = vmatprep.mubr.bf16.mxu0 0
    %292 = vmatmul.mubr.bf16.gmra.mxu0 %v160
    %v293 = vpop.f32.mrf.mxu0
    %v294 = vadd.f32 0.0, %v293
    %v295 = vpop.f32.mrf.mxu0
    %v296 = vpop.f32.mrf.mxu0
    %v297 = vadd.f32 0.0, %v296
    %v298 = vpop.f32.mrf.mxu0
    %299 = vmatprep.mubr.bf16.mxu0 0
    %300 = vmatmul.mubr.bf16.gmra.mxu0 %v161
    %v301 = vpop.f32.mrf.mxu0
    %v302 = vadd.f32 0.0, %v301
    %v303 = vpop.f32.mrf.mxu0
    %v304 = vpop.f32.mrf.mxu0
    %v305 = vadd.f32 0.0, %v304
    %v306 = vpop.f32.mrf.mxu0
    %307 = vmatprep.mubr.bf16.mxu0 0
    %308 = vmatmul.mubr.bf16.gmra.mxu0 %v162
    %v309 = vpop.f32.mrf.mxu0
    %v310 = vadd.f32 0.0, %v309
    %v311 = vpop.f32.mrf.mxu0
    %v312 = vpop.f32.mrf.mxu0
    %v313 = vadd.f32 0.0, %v312
    %v314 = vpop.f32.mrf.mxu0
    %315 = vdwg.mxu0
    %v316 = vadd.f32 %v254, %v257
    %v317 = vadd.f32 %v316, %v262
    %v318 = vadd.f32 %v317, %v265
    %v319 = vadd.f32 %v318, %v270
    %v320 = vadd.f32 %v319, %v273
    %v321 = vadd.f32 %v320, %v278
    %v322 = vadd.f32 %v321, %v281
    %v323 = vadd.f32 %v322, %v286
    %v324 = vadd.f32 %v323, %v289
    %v325 = vadd.f32 %v324, %v294
    %v326 = vadd.f32 %v325, %v297
    %v327 = vadd.f32 %v326, %v302
    %v328 = vadd.f32 %v327, %v305
    %v329 = vadd.f32 %v328, %v310
    %v330 = vadd.f32 %v329, %v313
    %v331 = vrot.slane %v330, 4
    %v332 = vadd.f32 %v330, %v331
    %v333 = vrot.slane %v332, 2
    %v334 = vadd.f32 %v332, %v333
    %v335 = vrot.slane %v334, 1
    %v336 = vadd.f32 %v334, %v335
    %v337 = vmul.f32 %v254, %v254
    %v338 = vmul.f32 %v257, %v257
    %v339 = vmul.f32 %v262, %v262
    %v340 = vmul.f32 %v265, %v265
    %v341 = vmul.f32 %v270, %v270
    %v342 = vmul.f32 %v273, %v273
    %v343 = vmul.f32 %v278, %v278
    %v344 = vmul.f32 %v281, %v281
    %v345 = vmul.f32 %v286, %v286
    %v346 = vmul.f32 %v289, %v289
    %v347 = vmul.f32 %v294, %v294
    %v348 = vmul.f32 %v297, %v297
    %v349 = vmul.f32 %v302, %v302
    %v350 = vmul.f32 %v305, %v305
    %v351 = vmul.f32 %v310, %v310
    %v352 = vmul.f32 %v313, %v313
    %v353 = vadd.f32 %v337, %v338
    %v354 = vadd.f32 %v353, %v339
    %v355 = vadd.f32 %v354, %v340
    %v356 = vadd.f32 %v355, %v341
    %v357 = vadd.f32 %v356, %v342
    %v358 = vadd.f32 %v357, %v343
    %v359 = vadd.f32 %v358, %v344
    %v360 = vadd.f32 %v359, %v345
    %v361 = vadd.f32 %v360, %v346
    %v362 = vadd.f32 %v361, %v347
    %v363 = vadd.f32 %v362, %v348
    %v364 = vadd.f32 %v363, %v349
    %v365 = vadd.f32 %v364, %v350
    %v366 = vadd.f32 %v365, %v351
    %v367 = vadd.f32 %v366, %v352
    %v368 = vrot.slane %v367, 4
    %v369 = vadd.f32 %v367, %v368
    %v370 = vrot.slane %v369, 2
    %v371 = vadd.f32 %v369, %v370
    %v372 = vrot.slane %v371, 1
    %v373 = vadd.f32 %v371, %v372
    %v374 = vmul.f32 %v336, 0.0078125
    %v375 = vmul.f32 %v373, 0.0078125
    %v376 = vmul.f32 %v374, %v374
    %v377 = vsub.f32 %v375, %v376
    %v378 = vmax.f32 %v377, 0.0
    %v379 = vadd.f32 %v378, 1e-05
    %v380 = vrsqrt.pop %v379
    %v381 = vmul.f32 %v88, %v380
    %v382 = vmul.f32 %v374, %v381
    %v384 = vrot.slane %v382, 7
    %v386 = vsub.f32 %v88, %v384
    %v387 = vlaneseq
    %v388 = vshrl.u32 %v387, 7
    %v389 = vsub.s32 0, %v388
    %v390 = vrot.slane %v381, %v389
    %v391 = vmul.f32 %v254, %v390
    %v392 = vmul.f32 %v257, %v390
    %v393 = vmul.f32 %v262, %v390
    %v394 = vmul.f32 %v265, %v390
    %v395 = vmul.f32 %v270, %v390
    %v396 = vmul.f32 %v273, %v390
    %v397 = vmul.f32 %v278, %v390
    %v398 = vmul.f32 %v281, %v390
    %v399 = vmul.f32 %v286, %v390
    %v400 = vmul.f32 %v289, %v390
    %v401 = vmul.f32 %v294, %v390
    %v402 = vmul.f32 %v297, %v390
    %v403 = vmul.f32 %v302, %v390
    %v404 = vmul.f32 %v305, %v390
    %v405 = vmul.f32 %v310, %v390
    %v406 = vmul.f32 %v313, %v390
    %v407 = vlaneseq
    %v408 = vshrl.u32 %v407, 7
    %v409 = vsub.s32 1, %v408
    %v410 = vrot.slane %v386, %v409
    %v411 = vadd.f32 %v391, %v410
    %v412 = vadd.f32 %v392, %v410
    %v413 = vadd.f32 %v393, %v410
    %v414 = vadd.f32 %v394, %v410
    %v415 = vadd.f32 %v395, %v410
    %v416 = vadd.f32 %v396, %v410
    %v417 = vadd.f32 %v397, %v410
    %v418 = vadd.f32 %v398, %v410
    %v419 = vadd.f32 %v399, %v410
    %v420 = vadd.f32 %v400, %v410
    %v421 = vadd.f32 %v401, %v410
    %v422 = vadd.f32 %v402, %v410
    %v423 = vadd.f32 %v403, %v410
    %v424 = vadd.f32 %v404, %v410
    %v425 = vadd.f32 %v405, %v410
    %v426 = vadd.f32 %v406, %v410
    %v427 = vmax.f32 %v411, 0.0
    %v428 = vmax.f32 %v412, 0.0
    %v429 = vmax.f32 %v413, 0.0
    %v430 = vmax.f32 %v414, 0.0
    %v431 = vmax.f32 %v415, 0.0
    %v432 = vmax.f32 %v416, 0.0
    %v433 = vmax.f32 %v417, 0.0
    %v434 = vmax.f32 %v418, 0.0
    %v435 = vmax.f32 %v419, 0.0
    %v436 = vmax.f32 %v420, 0.0
    %v437 = vmax.f32 %v421, 0.0
    %v438 = vmax.f32 %v422, 0.0
    %v439 = vmax.f32 %v423, 0.0
    %v440 = vmax.f32 %v424, 0.0
    %v441 = vmax.f32 %v425, 0.0
    %v442 = vmax.f32 %v426, 0.0
    %v443 = vpack.c.bf16 %v428, %v427
    %v444 = vpack.c.bf16 %v430, %v429
    %v445 = vpack.c.bf16 %v432, %v431
    %v446 = vpack.c.bf16 %v434, %v433
    %v447 = vpack.c.bf16 %v436, %v435
    %v448 = vpack.c.bf16 %v438, %v437
    %v449 = vpack.c.bf16 %v440, %v439
    %v450 = vpack.c.bf16 %v442, %v441
    %s451 = scalar_lea.vmem [#allocation5], 64
    %v452 = vld [vmem:[%s451] sm:$0xf]
    %v453 = vld [vmem:[%s451 + $0x4] sm:$0xf]
    %v454 = vld [vmem:[%s451 + $0x8] sm:$0xf]
    %v455 = vld [vmem:[%s451 + $0xc] sm:$0xf]
    %v456 = vld [vmem:[%s451 + $0x10] sm:$0xf]
    %v457 = vld [vmem:[%s451 + $0x14] sm:$0xf]
    %v458 = vld [vmem:[%s451 + $0x18] sm:$0xf]
    %v459 = vld [vmem:[%s451 + $0x1c] sm:$0xf]
    %v460 = vld [vmem:[%s451 + $0x20] sm:$0xf]
    %v461 = vld [vmem:[%s451 + $0x24] sm:$0xf]
    %v462 = vld [vmem:[%s451 + $0x28] sm:$0xf]
    %v463 = vld [vmem:[%s451 + $0x2c] sm:$0xf]
    %v464 = vld [vmem:[%s451 + $0x30] sm:$0xf]
    %v465 = vld [vmem:[%s451 + $0x34] sm:$0xf]
    %v466 = vld [vmem:[%s451 + $0x38] sm:$0xf]
    %v467 = vld [vmem:[%s451 + $0x3c] sm:$0xf]
    %v484 = vunpack.c.l.b16 %v452
    %v485 = vunpack.c.l.b16 %v453
    %v486 = vunpack.c.l.b16 %v454
    %v487 = vunpack.c.l.b16 %v455
    %v488 = vunpack.c.l.b16 %v456
    %v489 = vunpack.c.l.b16 %v457
    %v490 = vunpack.c.l.b16 %v458
    %v491 = vunpack.c.l.b16 %v459
    %v492 = vunpack.c.l.b16 %v460
    %v493 = vunpack.c.l.b16 %v461
    %v494 = vunpack.c.l.b16 %v462
    %v495 = vunpack.c.l.b16 %v463
    %v496 = vunpack.c.l.b16 %v464
    %v497 = vunpack.c.l.b16 %v465
    %v498 = vunpack.c.l.b16 %v466
    %v499 = vunpack.c.l.b16 %v467
    %v500 = vpack.c.b16 %v485, %v484
    %v501 = vpack.c.b16 %v487, %v486
    %v502 = vpack.c.b16 %v489, %v488
    %v503 = vpack.c.b16 %v491, %v490
    %v504 = vpack.c.b16 %v493, %v492
    %v505 = vpack.c.b16 %v495, %v494
    %v506 = vpack.c.b16 %v497, %v496
    %v507 = vpack.c.b16 %v499, %v498
    %516 = vmatprep.subr.bf16.mxu0 0
    %517 = vmatpush1.bf16.msra.mxu0 %v507
    %518 = vmatprep.subr.bf16.mxu0 0
    %519 = vmatpush1.bf16.msra.mxu0 %v506
    %520 = vmatprep.subr.bf16.mxu0 0
    %521 = vmatpush1.bf16.msra.mxu0 %v505
    %522 = vmatprep.subr.bf16.mxu0 0
    %523 = vmatpush1.bf16.msra.mxu0 %v504
    %524 = vmatprep.subr.bf16.mxu0 0
    %525 = vmatpush1.bf16.msra.mxu0 %v503
    %526 = vmatprep.subr.bf16.mxu0 0
    %527 = vmatpush1.bf16.msra.mxu0 %v502
    %528 = vmatprep.subr.bf16.mxu0 0
    %529 = vmatpush1.bf16.msra.mxu0 %v501
    %530 = vmatprep.subr.bf16.mxu0 0
    %531 = vmatpush1.bf16.msra.mxu0 %v500
    %532 = vmatprep.subr.bf16.mxu0 0
    %533 = vmatpush2.bf16.msra.mxu0 0
    %534 = vmatprep.subr.bf16.mxu0 0
    %535 = vmatpush2.bf16.msra.mxu0 0
    %536 = vmatprep.subr.bf16.mxu0 0
    %537 = vmatpush2.bf16.msra.mxu0 0
    %538 = vmatprep.subr.bf16.mxu0 0
    %539 = vmatpush2.bf16.msra.mxu0 0
    %540 = vmatprep.subr.bf16.mxu0 0
    %541 = vmatpush2.bf16.msra.mxu0 0
    %542 = vmatprep.subr.bf16.mxu0 0
    %543 = vmatpush2.bf16.msra.mxu0 0
    %544 = vmatprep.subr.bf16.mxu0 0
    %545 = vmatpush2.bf16.msra.mxu0 0
    %546 = vmatprep.subr.bf16.mxu0 0
    %547 = vmatpush2.bf16.msra.mxu0 0
    %548 = vmatprep.mubr.bf16.mxu0 0
    %549 = vmatmul.mubr.bf16.gmra.mxu0 %v443
    %v550 = vpop.f32.mrf.mxu0
    %v551 = vadd.f32 0.0, %v550
    %v552 = vpop.f32.mrf.mxu0
    %v553 = vpop.f32.mrf.mxu0
    %v554 = vadd.f32 0.0, %v553
    %v555 = vpop.f32.mrf.mxu0
    %556 = vmatprep.mubr.bf16.mxu0 0
    %557 = vmatmul.mubr.bf16.gmra.mxu0 %v444
    %v558 = vpop.f32.mrf.mxu0
    %v559 = vadd.f32 0.0, %v558
    %v560 = vpop.f32.mrf.mxu0
    %v561 = vpop.f32.mrf.mxu0
    %v562 = vadd.f32 0.0, %v561
    %v563 = vpop.f32.mrf.mxu0
    %564 = vmatprep.mubr.bf16.mxu0 0
    %565 = vmatmul.mubr.bf16.gmra.mxu0 %v445
    %v566 = vpop.f32.mrf.mxu0
    %v567 = vadd.f32 0.0, %v566
    %v568 = vpop.f32.mrf.mxu0
    %v569 = vpop.f32.mrf.mxu0
    %v570 = vadd.f32 0.0, %v569
    %v571 = vpop.f32.mrf.mxu0
    %572 = vmatprep.mubr.bf16.mxu0 0
    %573 = vmatmul.mubr.bf16.gmra.mxu0 %v446
    %v574 = vpop.f32.mrf.mxu0
    %v575 = vadd.f32 0.0, %v574
    %v576 = vpop.f32.mrf.mxu0
    %v577 = vpop.f32.mrf.mxu0
    %v578 = vadd.f32 0.0, %v577
    %v579 = vpop.f32.mrf.mxu0
    %580 = vmatprep.mubr.bf16.mxu0 0
    %581 = vmatmul.mubr.bf16.gmra.mxu0 %v447
    %v582 = vpop.f32.mrf.mxu0
    %v583 = vadd.f32 0.0, %v582
    %v584 = vpop.f32.mrf.mxu0
    %v585 = vpop.f32.mrf.mxu0
    %v586 = vadd.f32 0.0, %v585
    %v587 = vpop.f32.mrf.mxu0
    %588 = vmatprep.mubr.bf16.mxu0 0
    %589 = vmatmul.mubr.bf16.gmra.mxu0 %v448
    %v590 = vpop.f32.mrf.mxu0
    %v591 = vadd.f32 0.0, %v590
    %v592 = vpop.f32.mrf.mxu0
    %v593 = vpop.f32.mrf.mxu0
    %v594 = vadd.f32 0.0, %v593
    %v595 = vpop.f32.mrf.mxu0
    %596 = vmatprep.mubr.bf16.mxu0 0
    %597 = vmatmul.mubr.bf16.gmra.mxu0 %v449
    %v598 = vpop.f32.mrf.mxu0
    %v599 = vadd.f32 0.0, %v598
    %v600 = vpop.f32.mrf.mxu0
    %v601 = vpop.f32.mrf.mxu0
    %v602 = vadd.f32 0.0, %v601
    %v603 = vpop.f32.mrf.mxu0
    %604 = vmatprep.mubr.bf16.mxu0 0
    %605 = vmatmul.mubr.bf16.gmra.mxu0 %v450
    %v606 = vpop.f32.mrf.mxu0
    %v607 = vadd.f32 0.0, %v606
    %v608 = vpop.f32.mrf.mxu0
    %v609 = vpop.f32.mrf.mxu0
    %v610 = vadd.f32 0.0, %v609
    %v611 = vpop.f32.mrf.mxu0
    %612 = vdwg.mxu0
    %v613 = vadd.f32 %v551, %v554
    %v614 = vadd.f32 %v613, %v559
    %v615 = vadd.f32 %v614, %v562
    %v616 = vadd.f32 %v615, %v567
    %v617 = vadd.f32 %v616, %v570
    %v618 = vadd.f32 %v617, %v575
    %v619 = vadd.f32 %v618, %v578
    %v620 = vadd.f32 %v619, %v583
    %v621 = vadd.f32 %v620, %v586
    %v622 = vadd.f32 %v621, %v591
    %v623 = vadd.f32 %v622, %v594
    %v624 = vadd.f32 %v623, %v599
    %v625 = vadd.f32 %v624, %v602
    %v626 = vadd.f32 %v625, %v607
    %v627 = vadd.f32 %v626, %v610
    %v628 = vrot.slane %v627, 4
    %v629 = vadd.f32 %v627, %v628
    %v630 = vrot.slane %v629, 2
    %v631 = vadd.f32 %v629, %v630
    %v632 = vrot.slane %v631, 1
    %v633 = vadd.f32 %v631, %v632
    %v634 = vmul.f32 %v551, %v551
    %v635 = vmul.f32 %v554, %v554
    %v636 = vmul.f32 %v559, %v559
    %v637 = vmul.f32 %v562, %v562
    %v638 = vmul.f32 %v567, %v567
    %v639 = vmul.f32 %v570, %v570
    %v640 = vmul.f32 %v575, %v575
    %v641 = vmul.f32 %v578, %v578
    %v642 = vmul.f32 %v583, %v583
    %v643 = vmul.f32 %v586, %v586
    %v644 = vmul.f32 %v591, %v591
    %v645 = vmul.f32 %v594, %v594
    %v646 = vmul.f32 %v599, %v599
    %v647 = vmul.f32 %v602, %v602
    %v648 = vmul.f32 %v607, %v607
    %v649 = vmul.f32 %v610, %v610
    %v650 = vadd.f32 %v634, %v635
    %v651 = vadd.f32 %v650, %v636
    %v652 = vadd.f32 %v651, %v637
    %v653 = vadd.f32 %v652, %v638
    %v654 = vadd.f32 %v653, %v639
    %v655 = vadd.f32 %v654, %v640
    %v656 = vadd.f32 %v655, %v641
    %v657 = vadd.f32 %v656, %v642
    %v658 = vadd.f32 %v657, %v643
    %v659 = vadd.f32 %v658, %v644
    %v660 = vadd.f32 %v659, %v645
    %v661 = vadd.f32 %v660, %v646
    %v662 = vadd.f32 %v661, %v647
    %v663 = vadd.f32 %v662, %v648
    %v664 = vadd.f32 %v663, %v649
    %v665 = vrot.slane %v664, 4
    %v666 = vadd.f32 %v664, %v665
    %v667 = vrot.slane %v666, 2
    %v668 = vadd.f32 %v666, %v667
    %v669 = vrot.slane %v668, 1
    %v670 = vadd.f32 %v668, %v669
    %v671 = vmul.f32 %v633, 0.0078125
    %v672 = vmul.f32 %v670, 0.0078125
    %v673 = vmul.f32 %v671, %v671
    %v674 = vsub.f32 %v672, %v673
    %v675 = vmax.f32 %v674, 0.0
    %v676 = vadd.f32 %v675, 1e-05
    %v677 = vrsqrt.pop %v676
    %v679 = vrot.slane %v88, 4
    %v681 = vmul.f32 %v679, %v677
    %v682 = vmul.f32 %v671, %v681
    %v684 = vrot.slane %v682, 7
    %v686 = vsub.f32 %v679, %v684
    %v687 = vlaneseq
    %v688 = vshrl.u32 %v687, 7
    %v689 = vsub.s32 0, %v688
    %v690 = vrot.slane %v681, %v689
    %v691 = vmul.f32 %v551, %v690
    %v692 = vmul.f32 %v554, %v690
    %v693 = vmul.f32 %v559, %v690
    %v694 = vmul.f32 %v562, %v690
    %v695 = vmul.f32 %v567, %v690
    %v696 = vmul.f32 %v570, %v690
    %v697 = vmul.f32 %v575, %v690
    %v698 = vmul.f32 %v578, %v690
    %v699 = vmul.f32 %v583, %v690
    %v700 = vmul.f32 %v586, %v690
    %v701 = vmul.f32 %v591, %v690
    %v702 = vmul.f32 %v594, %v690
    %v703 = vmul.f32 %v599, %v690
    %v704 = vmul.f32 %v602, %v690
    %v705 = vmul.f32 %v607, %v690
    %v706 = vmul.f32 %v610, %v690
    %v707 = vlaneseq
    %v708 = vshrl.u32 %v707, 7
    %v709 = vsub.s32 1, %v708
    %v710 = vrot.slane %v686, %v709
    %v711 = vadd.f32 %v691, %v710
    %v712 = vadd.f32 %v692, %v710
    %v713 = vadd.f32 %v693, %v710
    %v714 = vadd.f32 %v694, %v710
    %v715 = vadd.f32 %v695, %v710
    %v716 = vadd.f32 %v696, %v710
    %v717 = vadd.f32 %v697, %v710
    %v718 = vadd.f32 %v698, %v710
    %v719 = vadd.f32 %v699, %v710
    %v720 = vadd.f32 %v700, %v710
    %v721 = vadd.f32 %v701, %v710
    %v722 = vadd.f32 %v702, %v710
    %v723 = vadd.f32 %v703, %v710
    %v724 = vadd.f32 %v704, %v710
    %v725 = vadd.f32 %v705, %v710
    %v726 = vadd.f32 %v706, %v710
    %v727 = vmax.f32 %v711, 0.0
    %v728 = vmax.f32 %v712, 0.0
    %v729 = vmax.f32 %v713, 0.0
    %v730 = vmax.f32 %v714, 0.0
    %v731 = vmax.f32 %v715, 0.0
    %v732 = vmax.f32 %v716, 0.0
    %v733 = vmax.f32 %v717, 0.0
    %v734 = vmax.f32 %v718, 0.0
    %v735 = vmax.f32 %v719, 0.0
    %v736 = vmax.f32 %v720, 0.0
    %v737 = vmax.f32 %v721, 0.0
    %v738 = vmax.f32 %v722, 0.0
    %v739 = vmax.f32 %v723, 0.0
    %v740 = vmax.f32 %v724, 0.0
    %v741 = vmax.f32 %v725, 0.0
    %v742 = vmax.f32 %v726, 0.0
    %v743 = vpack.c.bf16 %v728, %v727
    %v744 = vpack.c.bf16 %v730, %v729
    %v745 = vpack.c.bf16 %v732, %v731
    %v746 = vpack.c.bf16 %v734, %v733
    %v747 = vpack.c.bf16 %v736, %v735
    %v748 = vpack.c.bf16 %v738, %v737
    %v749 = vpack.c.bf16 %v740, %v739
    %v750 = vpack.c.bf16 %v742, %v741
    %s751 = scalar_lea.vmem [#allocation5], 128
    %v752 = vld [vmem:[%s751] sm:$0xf]
    %v753 = vld [vmem:[%s751 + $0x4] sm:$0xf]
    %v754 = vld [vmem:[%s751 + $0x8] sm:$0xf]
    %v755 = vld [vmem:[%s751 + $0xc] sm:$0xf]
    %v756 = vld [vmem:[%s751 + $0x10] sm:$0xf]
    %v757 = vld [vmem:[%s751 + $0x14] sm:$0xf]
    %v758 = vld [vmem:[%s751 + $0x18] sm:$0xf]
    %v759 = vld [vmem:[%s751 + $0x1c] sm:$0xf]
    %v760 = vld [vmem:[%s751 + $0x20] sm:$0xf]
    %v761 = vld [vmem:[%s751 + $0x24] sm:$0xf]
    %v762 = vld [vmem:[%s751 + $0x28] sm:$0xf]
    %v763 = vld [vmem:[%s751 + $0x2c] sm:$0xf]
    %v764 = vld [vmem:[%s751 + $0x30] sm:$0xf]
    %v765 = vld [vmem:[%s751 + $0x34] sm:$0xf]
    %v766 = vld [vmem:[%s751 + $0x38] sm:$0xf]
    %v767 = vld [vmem:[%s751 + $0x3c] sm:$0xf]
    %v784 = vunpack.c.l.b16 %v752
    %v785 = vunpack.c.l.b16 %v753
    %v786 = vunpack.c.l.b16 %v754
    %v787 = vunpack.c.l.b16 %v755
    %v788 = vunpack.c.l.b16 %v756
    %v789 = vunpack.c.l.b16 %v757
    %v790 = vunpack.c.l.b16 %v758
    %v791 = vunpack.c.l.b16 %v759
    %v792 = vunpack.c.l.b16 %v760
    %v793 = vunpack.c.l.b16 %v761
    %v794 = vunpack.c.l.b16 %v762
    %v795 = vunpack.c.l.b16 %v763
    %v796 = vunpack.c.l.b16 %v764
    %v797 = vunpack.c.l.b16 %v765
    %v798 = vunpack.c.l.b16 %v766
    %v799 = vunpack.c.l.b16 %v767
    %v800 = vpack.c.b16 %v785, %v784
    %v801 = vpack.c.b16 %v787, %v786
    %v802 = vpack.c.b16 %v789, %v788
    %v803 = vpack.c.b16 %v791, %v790
    %v804 = vpack.c.b16 %v793, %v792
    %v805 = vpack.c.b16 %v795, %v794
    %v806 = vpack.c.b16 %v797, %v796
    %v807 = vpack.c.b16 %v799, %v798
    %816 = vmatprep.subr.bf16.mxu0 0
    %817 = vmatpush1.bf16.msra.mxu0 %v807
    %818 = vmatprep.subr.bf16.mxu0 0
    %819 = vmatpush1.bf16.msra.mxu0 %v806
    %820 = vmatprep.subr.bf16.mxu0 0
    %821 = vmatpush1.bf16.msra.mxu0 %v805
    %822 = vmatprep.subr.bf16.mxu0 0
    %823 = vmatpush1.bf16.msra.mxu0 %v804
    %824 = vmatprep.subr.bf16.mxu0 0
    %825 = vmatpush1.bf16.msra.mxu0 %v803
    %826 = vmatprep.subr.bf16.mxu0 0
    %827 = vmatpush1.bf16.msra.mxu0 %v802
    %828 = vmatprep.subr.bf16.mxu0 0
    %829 = vmatpush1.bf16.msra.mxu0 %v801
    %830 = vmatprep.subr.bf16.mxu0 0
    %831 = vmatpush1.bf16.msra.mxu0 %v800
    %832 = vmatprep.subr.bf16.mxu0 0
    %833 = vmatpush2.bf16.msra.mxu0 0
    %834 = vmatprep.subr.bf16.mxu0 0
    %835 = vmatpush2.bf16.msra.mxu0 0
    %836 = vmatprep.subr.bf16.mxu0 0
    %837 = vmatpush2.bf16.msra.mxu0 0
    %838 = vmatprep.subr.bf16.mxu0 0
    %839 = vmatpush2.bf16.msra.mxu0 0
    %840 = vmatprep.subr.bf16.mxu0 0
    %841 = vmatpush2.bf16.msra.mxu0 0
    %842 = vmatprep.subr.bf16.mxu0 0
    %843 = vmatpush2.bf16.msra.mxu0 0
    %844 = vmatprep.subr.bf16.mxu0 0
    %845 = vmatpush2.bf16.msra.mxu0 0
    %846 = vmatprep.subr.bf16.mxu0 0
    %847 = vmatpush2.bf16.msra.mxu0 0
    %848 = vmatprep.mubr.bf16.mxu0 0
    %849 = vmatmul.mubr.bf16.gmra.mxu0 %v743
    %v850 = vpop.f32.mrf.mxu0
    %v851 = vadd.f32 0.0, %v850
    %v852 = vpop.f32.mrf.mxu0
    %v853 = vpop.f32.mrf.mxu0
    %v854 = vadd.f32 0.0, %v853
    %v855 = vpop.f32.mrf.mxu0
    %856 = vmatprep.mubr.bf16.mxu0 0
    %857 = vmatmul.mubr.bf16.gmra.mxu0 %v744
    %v858 = vpop.f32.mrf.mxu0
    %v859 = vadd.f32 0.0, %v858
    %v860 = vpop.f32.mrf.mxu0
    %v861 = vpop.f32.mrf.mxu0
    %v862 = vadd.f32 0.0, %v861
    %v863 = vpop.f32.mrf.mxu0
    %864 = vmatprep.mubr.bf16.mxu0 0
    %865 = vmatmul.mubr.bf16.gmra.mxu0 %v745
    %v866 = vpop.f32.mrf.mxu0
    %v867 = vadd.f32 0.0, %v866
    %v868 = vpop.f32.mrf.mxu0
    %v869 = vpop.f32.mrf.mxu0
    %v870 = vadd.f32 0.0, %v869
    %v871 = vpop.f32.mrf.mxu0
    %872 = vmatprep.mubr.bf16.mxu0 0
    %873 = vmatmul.mubr.bf16.gmra.mxu0 %v746
    %v874 = vpop.f32.mrf.mxu0
    %v875 = vadd.f32 0.0, %v874
    %v876 = vpop.f32.mrf.mxu0
    %v877 = vpop.f32.mrf.mxu0
    %v878 = vadd.f32 0.0, %v877
    %v879 = vpop.f32.mrf.mxu0
    %880 = vmatprep.mubr.bf16.mxu0 0
    %881 = vmatmul.mubr.bf16.gmra.mxu0 %v747
    %v882 = vpop.f32.mrf.mxu0
    %v883 = vadd.f32 0.0, %v882
    %v884 = vpop.f32.mrf.mxu0
    %v885 = vpop.f32.mrf.mxu0
    %v886 = vadd.f32 0.0, %v885
    %v887 = vpop.f32.mrf.mxu0
    %888 = vmatprep.mubr.bf16.mxu0 0
    %889 = vmatmul.mubr.bf16.gmra.mxu0 %v748
    %v890 = vpop.f32.mrf.mxu0
    %v891 = vadd.f32 0.0, %v890
    %v892 = vpop.f32.mrf.mxu0
    %v893 = vpop.f32.mrf.mxu0
    %v894 = vadd.f32 0.0, %v893
    %v895 = vpop.f32.mrf.mxu0
    %896 = vmatprep.mubr.bf16.mxu0 0
    %897 = vmatmul.mubr.bf16.gmra.mxu0 %v749
    %v898 = vpop.f32.mrf.mxu0
    %v899 = vadd.f32 0.0, %v898
    %v900 = vpop.f32.mrf.mxu0
    %v901 = vpop.f32.mrf.mxu0
    %v902 = vadd.f32 0.0, %v901
    %v903 = vpop.f32.mrf.mxu0
    %904 = vmatprep.mubr.bf16.mxu0 0
    %905 = vmatmul.mubr.bf16.gmra.mxu0 %v750
    %v906 = vpop.f32.mrf.mxu0
    %v907 = vadd.f32 0.0, %v906
    %v908 = vpop.f32.mrf.mxu0
    %v909 = vpop.f32.mrf.mxu0
    %v910 = vadd.f32 0.0, %v909
    %v911 = vpop.f32.mrf.mxu0
    %912 = vdwg.mxu0
    %v913 = vadd.f32 %v851, %v854
    %v914 = vadd.f32 %v913, %v859
    %v915 = vadd.f32 %v914, %v862
    %v916 = vadd.f32 %v915, %v867
    %v917 = vadd.f32 %v916, %v870
    %v918 = vadd.f32 %v917, %v875
    %v919 = vadd.f32 %v918, %v878
    %v920 = vadd.f32 %v919, %v883
    %v921 = vadd.f32 %v920, %v886
    %v922 = vadd.f32 %v921, %v891
    %v923 = vadd.f32 %v922, %v894
    %v924 = vadd.f32 %v923, %v899
    %v925 = vadd.f32 %v924, %v902
    %v926 = vadd.f32 %v925, %v907
    %v927 = vadd.f32 %v926, %v910
    %v928 = vrot.slane %v927, 4
    %v929 = vadd.f32 %v927, %v928
    %v930 = vrot.slane %v929, 2
    %v931 = vadd.f32 %v929, %v930
    %v932 = vrot.slane %v931, 1
    %v933 = vadd.f32 %v931, %v932
    %v934 = vmul.f32 %v851, %v851
    %v935 = vmul.f32 %v854, %v854
    %v936 = vmul.f32 %v859, %v859
    %v937 = vmul.f32 %v862, %v862
    %v938 = vmul.f32 %v867, %v867
    %v939 = vmul.f32 %v870, %v870
    %v940 = vmul.f32 %v875, %v875
    %v941 = vmul.f32 %v878, %v878
    %v942 = vmul.f32 %v883, %v883
    %v943 = vmul.f32 %v886, %v886
    %v944 = vmul.f32 %v891, %v891
    %v945 = vmul.f32 %v894, %v894
    %v946 = vmul.f32 %v899, %v899
    %v947 = vmul.f32 %v902, %v902
    %v948 = vmul.f32 %v907, %v907
    %v949 = vmul.f32 %v910, %v910
    %v950 = vadd.f32 %v934, %v935
    %v951 = vadd.f32 %v950, %v936
    %v952 = vadd.f32 %v951, %v937
    %v953 = vadd.f32 %v952, %v938
    %v954 = vadd.f32 %v953, %v939
    %v955 = vadd.f32 %v954, %v940
    %v956 = vadd.f32 %v955, %v941
    %v957 = vadd.f32 %v956, %v942
    %v958 = vadd.f32 %v957, %v943
    %v959 = vadd.f32 %v958, %v944
    %v960 = vadd.f32 %v959, %v945
    %v961 = vadd.f32 %v960, %v946
    %v962 = vadd.f32 %v961, %v947
    %v963 = vadd.f32 %v962, %v948
    %v964 = vadd.f32 %v963, %v949
    %v965 = vrot.slane %v964, 4
    %v966 = vadd.f32 %v964, %v965
    %v967 = vrot.slane %v966, 2
    %v968 = vadd.f32 %v966, %v967
    %v969 = vrot.slane %v968, 1
    %v970 = vadd.f32 %v968, %v969
    %v971 = vmul.f32 %v933, 0.0078125
    %v972 = vmul.f32 %v970, 0.0078125
    %v973 = vmul.f32 %v971, %v971
    %v974 = vsub.f32 %v972, %v973
    %v975 = vmax.f32 %v974, 0.0
    %v976 = vadd.f32 %v975, 1e-05
    %v977 = vrsqrt.pop %v976
    %v978 = vmul.f32 %v89, %v977
    %v979 = vmul.f32 %v971, %v978
    %v981 = vrot.slane %v979, 7
    %v983 = vsub.f32 %v89, %v981
    %v984 = vlaneseq
    %v985 = vshrl.u32 %v984, 7
    %v986 = vsub.s32 0, %v985
    %v987 = vrot.slane %v978, %v986
    %v988 = vmul.f32 %v851, %v987
    %v989 = vmul.f32 %v854, %v987
    %v990 = vmul.f32 %v859, %v987
    %v991 = vmul.f32 %v862, %v987
    %v992 = vmul.f32 %v867, %v987
    %v993 = vmul.f32 %v870, %v987
    %v994 = vmul.f32 %v875, %v987
    %v995 = vmul.f32 %v878, %v987
    %v996 = vmul.f32 %v883, %v987
    %v997 = vmul.f32 %v886, %v987
    %v998 = vmul.f32 %v891, %v987
    %v999 = vmul.f32 %v894, %v987
    %v1000 = vmul.f32 %v899, %v987
    %v1001 = vmul.f32 %v902, %v987
    %v1002 = vmul.f32 %v907, %v987
    %v1003 = vmul.f32 %v910, %v987
    %v1004 = vlaneseq
    %v1005 = vshrl.u32 %v1004, 7
    %v1006 = vsub.s32 1, %v1005
    %v1007 = vrot.slane %v983, %v1006
    %v1008 = vadd.f32 %v988, %v1007
    %v1009 = vadd.f32 %v989, %v1007
    %v1010 = vadd.f32 %v990, %v1007
    %v1011 = vadd.f32 %v991, %v1007
    %v1012 = vadd.f32 %v992, %v1007
    %v1013 = vadd.f32 %v993, %v1007
    %v1014 = vadd.f32 %v994, %v1007
    %v1015 = vadd.f32 %v995, %v1007
    %v1016 = vadd.f32 %v996, %v1007
    %v1017 = vadd.f32 %v997, %v1007
    %v1018 = vadd.f32 %v998, %v1007
    %v1019 = vadd.f32 %v999, %v1007
    %v1020 = vadd.f32 %v1000, %v1007
    %v1021 = vadd.f32 %v1001, %v1007
    %v1022 = vadd.f32 %v1002, %v1007
    %v1023 = vadd.f32 %v1003, %v1007
    %v1024 = vmax.f32 %v1008, 0.0
    %v1025 = vmax.f32 %v1009, 0.0
    %v1026 = vmax.f32 %v1010, 0.0
    %v1027 = vmax.f32 %v1011, 0.0
    %v1028 = vmax.f32 %v1012, 0.0
    %v1029 = vmax.f32 %v1013, 0.0
    %v1030 = vmax.f32 %v1014, 0.0
    %v1031 = vmax.f32 %v1015, 0.0
    %v1032 = vmax.f32 %v1016, 0.0
    %v1033 = vmax.f32 %v1017, 0.0
    %v1034 = vmax.f32 %v1018, 0.0
    %v1035 = vmax.f32 %v1019, 0.0
    %v1036 = vmax.f32 %v1020, 0.0
    %v1037 = vmax.f32 %v1021, 0.0
    %v1038 = vmax.f32 %v1022, 0.0
    %v1039 = vmax.f32 %v1023, 0.0
    %v1040 = vpack.c.bf16 %v1025, %v1024
    %v1041 = vpack.c.bf16 %v1027, %v1026
    %v1042 = vpack.c.bf16 %v1029, %v1028
    %v1043 = vpack.c.bf16 %v1031, %v1030
    %v1044 = vpack.c.bf16 %v1033, %v1032
    %v1045 = vpack.c.bf16 %v1035, %v1034
    %v1046 = vpack.c.bf16 %v1037, %v1036
    %v1047 = vpack.c.bf16 %v1039, %v1038
    %v1048 = vld [vmem:[#allocation7] sm:$0xff]
    %v1049 = vld [vmem:[#allocation7 + $0x8] sm:$0xff]
    %v1050 = vld [vmem:[#allocation7 + $0x10] sm:$0xff]
    %v1051 = vld [vmem:[#allocation7 + $0x18] sm:$0xff]
    %v1052 = vld [vmem:[#allocation7 + $0x20] sm:$0xff]
    %v1053 = vld [vmem:[#allocation7 + $0x28] sm:$0xff]
    %v1054 = vld [vmem:[#allocation7 + $0x30] sm:$0xff]
    %v1055 = vld [vmem:[#allocation7 + $0x38] sm:$0xff]
    %v1056 = vld [vmem:[#allocation7 + $0x40] sm:$0xff]
    %v1057 = vld [vmem:[#allocation7 + $0x48] sm:$0xff]
    %v1058 = vld [vmem:[#allocation7 + $0x50] sm:$0xff]
    %v1059 = vld [vmem:[#allocation7 + $0x58] sm:$0xff]
    %v1060 = vld [vmem:[#allocation7 + $0x60] sm:$0xff]
    %v1061 = vld [vmem:[#allocation7 + $0x68] sm:$0xff]
    %v1062 = vld [vmem:[#allocation7 + $0x70] sm:$0xff]
    %v1063 = vld [vmem:[#allocation7 + $0x78] sm:$0xff]
    %v1080 = vunpack.c.l.b16 %v1048
    %v1081 = vunpack.c.h.b16 %v1048
    %v1082 = vunpack.c.l.b16 %v1049
    %v1083 = vunpack.c.h.b16 %v1049
    %v1084 = vunpack.c.l.b16 %v1050
    %v1085 = vunpack.c.h.b16 %v1050
    %v1086 = vunpack.c.l.b16 %v1051
    %v1087 = vunpack.c.h.b16 %v1051
    %v1088 = vunpack.c.l.b16 %v1052
    %v1089 = vunpack.c.h.b16 %v1052
    %v1090 = vunpack.c.l.b16 %v1053
    %v1091 = vunpack.c.h.b16 %v1053
    %v1092 = vunpack.c.l.b16 %v1054
    %v1093 = vunpack.c.h.b16 %v1054
    %v1094 = vunpack.c.l.b16 %v1055
    %v1095 = vunpack.c.h.b16 %v1055
    %v1096 = vunpack.c.l.b16 %v1056
    %v1097 = vunpack.c.h.b16 %v1056
    %v1098 = vunpack.c.l.b16 %v1057
    %v1099 = vunpack.c.h.b16 %v1057
    %v1100 = vunpack.c.l.b16 %v1058
    %v1101 = vunpack.c.h.b16 %v1058
    %v1102 = vunpack.c.l.b16 %v1059
    %v1103 = vunpack.c.h.b16 %v1059
    %v1104 = vunpack.c.l.b16 %v1060
    %v1105 = vunpack.c.h.b16 %v1060
    %v1106 = vunpack.c.l.b16 %v1061
    %v1107 = vunpack.c.h.b16 %v1061
    %v1108 = vunpack.c.l.b16 %v1062
    %v1109 = vunpack.c.h.b16 %v1062
    %v1110 = vunpack.c.l.b16 %v1063
    %v1111 = vunpack.c.h.b16 %v1063
    %v1112 = vpack.c.b16 %v1082, %v1080
    %v1113 = vpack.c.b16 %v1083, %v1081
    %v1114 = vpack.c.b16 %v1086, %v1084
    %v1115 = vpack.c.b16 %v1087, %v1085
    %v1116 = vpack.c.b16 %v1090, %v1088
    %v1117 = vpack.c.b16 %v1091, %v1089
    %v1118 = vpack.c.b16 %v1094, %v1092
    %v1119 = vpack.c.b16 %v1095, %v1093
    %v1120 = vpack.c.b16 %v1098, %v1096
    %v1121 = vpack.c.b16 %v1099, %v1097
    %v1122 = vpack.c.b16 %v1102, %v1100
    %v1123 = vpack.c.b16 %v1103, %v1101
    %v1124 = vpack.c.b16 %v1106, %v1104
    %v1125 = vpack.c.b16 %v1107, %v1105
    %v1126 = vpack.c.b16 %v1110, %v1108
    %v1127 = vpack.c.b16 %v1111, %v1109
    %1144 = vmatprep.subr.bf16.mxu0 %v1127
    %1145 = vmatpush1.bf16.msra.mxu0 %v1126
    %1146 = vmatprep.subr.bf16.mxu0 %v1125
    %1147 = vmatpush1.bf16.msra.mxu0 %v1124
    %1148 = vmatprep.subr.bf16.mxu0 %v1123
    %1149 = vmatpush1.bf16.msra.mxu0 %v1122
    %1150 = vmatprep.subr.bf16.mxu0 %v1121
    %1151 = vmatpush1.bf16.msra.mxu0 %v1120
    %1152 = vmatprep.subr.bf16.mxu0 %v1119
    %1153 = vmatpush1.bf16.msra.mxu0 %v1118
    %1154 = vmatprep.subr.bf16.mxu0 %v1117
    %1155 = vmatpush1.bf16.msra.mxu0 %v1116
    %1156 = vmatprep.subr.bf16.mxu0 %v1115
    %1157 = vmatpush1.bf16.msra.mxu0 %v1114
    %1158 = vmatprep.subr.bf16.mxu0 %v1113
    %1159 = vmatpush1.bf16.msra.mxu0 %v1112
    %1160 = vmatprep.subr.bf16.mxu0 0
    %1161 = vmatpush2.bf16.msra.mxu0 0
    %1162 = vmatprep.subr.bf16.mxu0 0
    %1163 = vmatpush2.bf16.msra.mxu0 0
    %1164 = vmatprep.subr.bf16.mxu0 0
    %1165 = vmatpush2.bf16.msra.mxu0 0
    %1166 = vmatprep.subr.bf16.mxu0 0
    %1167 = vmatpush2.bf16.msra.mxu0 0
    %1168 = vmatprep.subr.bf16.mxu0 0
    %1169 = vmatpush2.bf16.msra.mxu0 0
    %1170 = vmatprep.subr.bf16.mxu0 0
    %1171 = vmatpush2.bf16.msra.mxu0 0
    %1172 = vmatprep.subr.bf16.mxu0 0
    %1173 = vmatpush2.bf16.msra.mxu0 0
    %1174 = vmatprep.subr.bf16.mxu0 0
    %1175 = vmatpush2.bf16.msra.mxu0 0
    %1176 = vmatprep.mubr.bf16.mxu0 0
    %1177 = vmatmul.mubr.bf16.gmra.mxu0 %v1040
    %v1178 = vpop.f32.mrf.mxu0
    %v1179 = vadd.f32 0.0, %v1178
    %v1180 = vpop.f32.mrf.mxu0
    %v1181 = vadd.f32 0.0, %v1180
    %v1182 = vpop.f32.mrf.mxu0
    %v1183 = vadd.f32 0.0, %v1182
    %v1184 = vpop.f32.mrf.mxu0
    %v1185 = vadd.f32 0.0, %v1184
    %1186 = vmatprep.mubr.bf16.mxu0 0
    %1187 = vmatmul.mubr.bf16.gmra.mxu0 %v1041
    %v1188 = vpop.f32.mrf.mxu0
    %v1189 = vadd.f32 0.0, %v1188
    %v1190 = vpop.f32.mrf.mxu0
    %v1191 = vadd.f32 0.0, %v1190
    %v1192 = vpop.f32.mrf.mxu0
    %v1193 = vadd.f32 0.0, %v1192
    %v1194 = vpop.f32.mrf.mxu0
    %v1195 = vadd.f32 0.0, %v1194
    %1196 = vmatprep.mubr.bf16.mxu0 0
    %1197 = vmatmul.mubr.bf16.gmra.mxu0 %v1042
    %v1198 = vpop.f32.mrf.mxu0
    %v1199 = vadd.f32 0.0, %v1198
    %v1200 = vpop.f32.mrf.mxu0
    %v1201 = vadd.f32 0.0, %v1200
    %v1202 = vpop.f32.mrf.mxu0
    %v1203 = vadd.f32 0.0, %v1202
    %v1204 = vpop.f32.mrf.mxu0
    %v1205 = vadd.f32 0.0, %v1204
    %1206 = vmatprep.mubr.bf16.mxu0 0
    %1207 = vmatmul.mubr.bf16.gmra.mxu0 %v1043
    %v1208 = vpop.f32.mrf.mxu0
    %v1209 = vadd.f32 0.0, %v1208
    %v1210 = vpop.f32.mrf.mxu0
    %v1211 = vadd.f32 0.0, %v1210
    %v1212 = vpop.f32.mrf.mxu0
    %v1213 = vadd.f32 0.0, %v1212
    %v1214 = vpop.f32.mrf.mxu0
    %v1215 = vadd.f32 0.0, %v1214
    %1216 = vmatprep.mubr.bf16.mxu0 0
    %1217 = vmatmul.mubr.bf16.gmra.mxu0 %v1044
    %v1218 = vpop.f32.mrf.mxu0
    %v1219 = vadd.f32 0.0, %v1218
    %v1220 = vpop.f32.mrf.mxu0
    %v1221 = vadd.f32 0.0, %v1220
    %v1222 = vpop.f32.mrf.mxu0
    %v1223 = vadd.f32 0.0, %v1222
    %v1224 = vpop.f32.mrf.mxu0
    %v1225 = vadd.f32 0.0, %v1224
    %1226 = vmatprep.mubr.bf16.mxu0 0
    %1227 = vmatmul.mubr.bf16.gmra.mxu0 %v1045
    %v1228 = vpop.f32.mrf.mxu0
    %v1229 = vadd.f32 0.0, %v1228
    %v1230 = vpop.f32.mrf.mxu0
    %v1231 = vadd.f32 0.0, %v1230
    %v1232 = vpop.f32.mrf.mxu0
    %v1233 = vadd.f32 0.0, %v1232
    %v1234 = vpop.f32.mrf.mxu0
    %v1235 = vadd.f32 0.0, %v1234
    %1236 = vmatprep.mubr.bf16.mxu0 0
    %1237 = vmatmul.mubr.bf16.gmra.mxu0 %v1046
    %v1238 = vpop.f32.mrf.mxu0
    %v1239 = vadd.f32 0.0, %v1238
    %v1240 = vpop.f32.mrf.mxu0
    %v1241 = vadd.f32 0.0, %v1240
    %v1242 = vpop.f32.mrf.mxu0
    %v1243 = vadd.f32 0.0, %v1242
    %v1244 = vpop.f32.mrf.mxu0
    %v1245 = vadd.f32 0.0, %v1244
    %1246 = vmatprep.mubr.bf16.mxu0 0
    %1247 = vmatmul.mubr.bf16.gmra.mxu0 %v1047
    %v1248 = vpop.f32.mrf.mxu0
    %v1249 = vadd.f32 0.0, %v1248
    %v1250 = vpop.f32.mrf.mxu0
    %v1251 = vadd.f32 0.0, %v1250
    %v1252 = vpop.f32.mrf.mxu0
    %v1253 = vadd.f32 0.0, %v1252
    %v1254 = vpop.f32.mrf.mxu0
    %v1255 = vadd.f32 0.0, %v1254
    %1256 = vdwg.mxu0
    %v1257 = vadd.f32 %v1179, %v1183
    %v1258 = vadd.f32 %v1257, %v1189
    %v1259 = vadd.f32 %v1258, %v1193
    %v1260 = vadd.f32 %v1259, %v1199
    %v1261 = vadd.f32 %v1260, %v1203
    %v1262 = vadd.f32 %v1261, %v1209
    %v1263 = vadd.f32 %v1262, %v1213
    %v1264 = vadd.f32 %v1263, %v1219
    %v1265 = vadd.f32 %v1264, %v1223
    %v1266 = vadd.f32 %v1265, %v1229
    %v1267 = vadd.f32 %v1266, %v1233
    %v1268 = vadd.f32 %v1267, %v1239
    %v1269 = vadd.f32 %v1268, %v1243
    %v1270 = vadd.f32 %v1269, %v1249
    %v1271 = vadd.f32 %v1270, %v1253
    %v1272 = vrot.slane %v1271, 4
    %v1273 = vadd.f32 %v1271, %v1272
    %v1274 = vrot.slane %v1273, 2
    %v1275 = vadd.f32 %v1273, %v1274
    %v1276 = vrot.slane %v1275, 1
    %v1277 = vadd.f32 %v1275, %v1276
    %v1278 = vadd.f32 %v1181, %v1185
    %v1279 = vadd.f32 %v1278, %v1191
    %v1280 = vadd.f32 %v1279, %v1195
    %v1281 = vadd.f32 %v1280, %v1201
    %v1282 = vadd.f32 %v1281, %v1205
    %v1283 = vadd.f32 %v1282, %v1211
    %v1284 = vadd.f32 %v1283, %v1215
    %v1285 = vadd.f32 %v1284, %v1221
    %v1286 = vadd.f32 %v1285, %v1225
    %v1287 = vadd.f32 %v1286, %v1231
    %v1288 = vadd.f32 %v1287, %v1235
    %v1289 = vadd.f32 %v1288, %v1241
    %v1290 = vadd.f32 %v1289, %v1245
    %v1291 = vadd.f32 %v1290, %v1251
    %v1292 = vadd.f32 %v1291, %v1255
    %v1293 = vrot.slane %v1292, 4
    %v1294 = vadd.f32 %v1292, %v1293
    %v1295 = vrot.slane %v1294, 2
    %v1296 = vadd.f32 %v1294, %v1295
    %v1297 = vrot.slane %v1296, 1
    %v1298 = vadd.f32 %v1296, %v1297
    %v1299 = vmul.f32 %v1179, %v1179
    %v1300 = vmul.f32 %v1181, %v1181
    %v1301 = vmul.f32 %v1183, %v1183
    %v1302 = vmul.f32 %v1185, %v1185
    %v1303 = vmul.f32 %v1189, %v1189
    %v1304 = vmul.f32 %v1191, %v1191
    %v1305 = vmul.f32 %v1193, %v1193
    %v1306 = vmul.f32 %v1195, %v1195
    %v1307 = vmul.f32 %v1199, %v1199
    %v1308 = vmul.f32 %v1201, %v1201
    %v1309 = vmul.f32 %v1203, %v1203
    %v1310 = vmul.f32 %v1205, %v1205
    %v1311 = vmul.f32 %v1209, %v1209
    %v1312 = vmul.f32 %v1211, %v1211
    %v1313 = vmul.f32 %v1213, %v1213
    %v1314 = vmul.f32 %v1215, %v1215
    %v1315 = vmul.f32 %v1219, %v1219
    %v1316 = vmul.f32 %v1221, %v1221
    %v1317 = vmul.f32 %v1223, %v1223
    %v1318 = vmul.f32 %v1225, %v1225
    %v1319 = vmul.f32 %v1229, %v1229
    %v1320 = vmul.f32 %v1231, %v1231
    %v1321 = vmul.f32 %v1233, %v1233
    %v1322 = vmul.f32 %v1235, %v1235
    %v1323 = vmul.f32 %v1239, %v1239
    %v1324 = vmul.f32 %v1241, %v1241
    %v1325 = vmul.f32 %v1243, %v1243
    %v1326 = vmul.f32 %v1245, %v1245
    %v1327 = vmul.f32 %v1249, %v1249
    %v1328 = vmul.f32 %v1251, %v1251
    %v1329 = vmul.f32 %v1253, %v1253
    %v1330 = vmul.f32 %v1255, %v1255
    %v1331 = vadd.f32 %v1299, %v1301
    %v1332 = vadd.f32 %v1331, %v1303
    %v1333 = vadd.f32 %v1332, %v1305
    %v1334 = vadd.f32 %v1333, %v1307
    %v1335 = vadd.f32 %v1334, %v1309
    %v1336 = vadd.f32 %v1335, %v1311
    %v1337 = vadd.f32 %v1336, %v1313
    %v1338 = vadd.f32 %v1337, %v1315
    %v1339 = vadd.f32 %v1338, %v1317
    %v1340 = vadd.f32 %v1339, %v1319
    %v1341 = vadd.f32 %v1340, %v1321
    %v1342 = vadd.f32 %v1341, %v1323
    %v1343 = vadd.f32 %v1342, %v1325
    %v1344 = vadd.f32 %v1343, %v1327
    %v1345 = vadd.f32 %v1344, %v1329
    %v1346 = vrot.slane %v1345, 4
    %v1347 = vadd.f32 %v1345, %v1346
    %v1348 = vrot.slane %v1347, 2
    %v1349 = vadd.f32 %v1347, %v1348
    %v1350 = vrot.slane %v1349, 1
    %v1351 = vadd.f32 %v1349, %v1350
    %v1352 = vadd.f32 %v1300, %v1302
    %v1353 = vadd.f32 %v1352, %v1304
    %v1354 = vadd.f32 %v1353, %v1306
    %v1355 = vadd.f32 %v1354, %v1308
    %v1356 = vadd.f32 %v1355, %v1310
    %v1357 = vadd.f32 %v1356, %v1312
    %v1358 = vadd.f32 %v1357, %v1314
    %v1359 = vadd.f32 %v1358, %v1316
    %v1360 = vadd.f32 %v1359, %v1318
    %v1361 = vadd.f32 %v1360, %v1320
    %v1362 = vadd.f32 %v1361, %v1322
    %v1363 = vadd.f32 %v1362, %v1324
    %v1364 = vadd.f32 %v1363, %v1326
    %v1365 = vadd.f32 %v1364, %v1328
    %v1366 = vadd.f32 %v1365, %v1330
    %v1367 = vrot.slane %v1366, 4
    %v1368 = vadd.f32 %v1366, %v1367
    %v1369 = vrot.slane %v1368, 2
    %v1370 = vadd.f32 %v1368, %v1369
    %v1371 = vrot.slane %v1370, 1
    %v1372 = vadd.f32 %v1370, %v1371
    %v1373 = vmul.f32 %v1277, 0.0078125
    %v1374 = vmul.f32 %v1298, 0.0078125
    %v1375 = vmul.f32 %v1351, 0.0078125
    %v1376 = vmul.f32 %v1372, 0.0078125
    %v1377 = vmul.f32 %v1373, %v1373
    %v1378 = vmul.f32 %v1374, %v1374
    %v1379 = vsub.f32 %v1375, %v1377
    %v1380 = vsub.f32 %v1376, %v1378
    %v1381 = vmax.f32 %v1379, 0.0
    %v1382 = vmax.f32 %v1380, 0.0
    %v1383 = vadd.f32 %v1381, 1e-05
    %v1384 = vadd.f32 %v1382, 1e-05
    %v1385 = vrsqrt.pop %v1383
    %v1386 = vrsqrt.pop %v1384
    %v1389 = vrot.slane %v89, 4
    %v1390 = vrot.slane %v90, 4
    %vm1391 = vcmask 1043456
    %v1392 = vsel %vm1391, %v1389, %v1390
    %v1396 = vcombine.low %v1385, %v1386
    %v1398 = vmul.f32 %v1392, %v1396
    %v1400 = vlaneseq
    %v1401 = vshrl.u32 %v1400, 7
    %v1402 = vsub.s32 0, %v1401
    %v1403 = vrot.slane %v1398, %v1402
    %v1404 = vlaneseq
    %v1405 = vshrl.u32 %v1404, 7
    %v1406 = vsub.s32 4, %v1405
    %v1407 = vrot.slane %v1398, %v1406
    %v1410 = vmul.f32 %v1373, %v1403
    %v1411 = vmul.f32 %v1374, %v1407
    %v1414 = vcombine.low %v1410, %v1411
    %v1415 = vrot.slane %v1414, 7
    %v1417 = vsub.f32 %v1392, %v1415
    %v1418 = vlaneseq
    %v1419 = vshrl.u32 %v1418, 7
    %v1420 = vsub.s32 0, %v1419
    %v1421 = vrot.slane %v1403, %v1420
    %v1422 = vlaneseq
    %v1423 = vshrl.u32 %v1422, 7
    %v1424 = vsub.s32 0, %v1423
    %v1425 = vrot.slane %v1407, %v1424
    %v1426 = vmul.f32 %v1179, %v1421
    %v1427 = vmul.f32 %v1181, %v1425
    %v1428 = vmul.f32 %v1183, %v1421
    %v1429 = vmul.f32 %v1185, %v1425
    %v1430 = vmul.f32 %v1189, %v1421
    %v1431 = vmul.f32 %v1191, %v1425
    %v1432 = vmul.f32 %v1193, %v1421
    %v1433 = vmul.f32 %v1195, %v1425
    %v1434 = vmul.f32 %v1199, %v1421
    %v1435 = vmul.f32 %v1201, %v1425
    %v1436 = vmul.f32 %v1203, %v1421
    %v1437 = vmul.f32 %v1205, %v1425
    %v1438 = vmul.f32 %v1209, %v1421
    %v1439 = vmul.f32 %v1211, %v1425
    %v1440 = vmul.f32 %v1213, %v1421
    %v1441 = vmul.f32 %v1215, %v1425
    %v1442 = vmul.f32 %v1219, %v1421
    %v1443 = vmul.f32 %v1221, %v1425
    %v1444 = vmul.f32 %v1223, %v1421
    %v1445 = vmul.f32 %v1225, %v1425
    %v1446 = vmul.f32 %v1229, %v1421
    %v1447 = vmul.f32 %v1231, %v1425
    %v1448 = vmul.f32 %v1233, %v1421
    %v1449 = vmul.f32 %v1235, %v1425
    %v1450 = vmul.f32 %v1239, %v1421
    %v1451 = vmul.f32 %v1241, %v1425
    %v1452 = vmul.f32 %v1243, %v1421
    %v1453 = vmul.f32 %v1245, %v1425
    %v1454 = vmul.f32 %v1249, %v1421
    %v1455 = vmul.f32 %v1251, %v1425
    %v1456 = vmul.f32 %v1253, %v1421
    %v1457 = vmul.f32 %v1255, %v1425
    %v1459 = vlaneseq
    %v1460 = vshrl.u32 %v1459, 7
    %v1461 = vsub.s32 1, %v1460
    %v1462 = vrot.slane %v1417, %v1461
    %v1463 = vlaneseq
    %v1464 = vshrl.u32 %v1463, 7
    %v1465 = vsub.s32 5, %v1464
    %v1466 = vrot.slane %v1417, %v1465
    %v1469 = vlaneseq
    %v1470 = vshrl.u32 %v1469, 7
    %v1471 = vsub.s32 1, %v1470
    %v1472 = vrot.slane %v1462, %v1471
    %v1473 = vlaneseq
    %v1474 = vshrl.u32 %v1473, 7
    %v1475 = vsub.s32 1, %v1474
    %v1476 = vrot.slane %v1466, %v1475
    %v1477 = vadd.f32 %v1426, %v1472
    %v1478 = vadd.f32 %v1427, %v1476
    %v1479 = vadd.f32 %v1428, %v1472
    %v1480 = vadd.f32 %v1429, %v1476
    %v1481 = vadd.f32 %v1430, %v1472
    %v1482 = vadd.f32 %v1431, %v1476
    %v1483 = vadd.f32 %v1432, %v1472
    %v1484 = vadd.f32 %v1433, %v1476
    %v1485 = vadd.f32 %v1434, %v1472
    %v1486 = vadd.f32 %v1435, %v1476
    %v1487 = vadd.f32 %v1436, %v1472
    %v1488 = vadd.f32 %v1437, %v1476
    %v1489 = vadd.f32 %v1438, %v1472
    %v1490 = vadd.f32 %v1439, %v1476
    %v1491 = vadd.f32 %v1440, %v1472
    %v1492 = vadd.f32 %v1441, %v1476
    %v1493 = vadd.f32 %v1442, %v1472
    %v1494 = vadd.f32 %v1443, %v1476
    %v1495 = vadd.f32 %v1444, %v1472
    %v1496 = vadd.f32 %v1445, %v1476
    %v1497 = vadd.f32 %v1446, %v1472
    %v1498 = vadd.f32 %v1447, %v1476
    %v1499 = vadd.f32 %v1448, %v1472
    %v1500 = vadd.f32 %v1449, %v1476
    %v1501 = vadd.f32 %v1450, %v1472
    %v1502 = vadd.f32 %v1451, %v1476
    %v1503 = vadd.f32 %v1452, %v1472
    %v1504 = vadd.f32 %v1453, %v1476
    %v1505 = vadd.f32 %v1454, %v1472
    %v1506 = vadd.f32 %v1455, %v1476
    %v1507 = vadd.f32 %v1456, %v1472
    %v1508 = vadd.f32 %v1457, %v1476
    %v1509 = vmax.f32 %v1477, 0.0
    %v1510 = vmax.f32 %v1478, 0.0
    %v1511 = vmax.f32 %v1479, 0.0
    %v1512 = vmax.f32 %v1480, 0.0
    %v1513 = vmax.f32 %v1481, 0.0
    %v1514 = vmax.f32 %v1482, 0.0
    %v1515 = vmax.f32 %v1483, 0.0
    %v1516 = vmax.f32 %v1484, 0.0
    %v1517 = vmax.f32 %v1485, 0.0
    %v1518 = vmax.f32 %v1486, 0.0
    %v1519 = vmax.f32 %v1487, 0.0
    %v1520 = vmax.f32 %v1488, 0.0
    %v1521 = vmax.f32 %v1489, 0.0
    %v1522 = vmax.f32 %v1490, 0.0
    %v1523 = vmax.f32 %v1491, 0.0
    %v1524 = vmax.f32 %v1492, 0.0
    %v1525 = vmax.f32 %v1493, 0.0
    %v1526 = vmax.f32 %v1494, 0.0
    %v1527 = vmax.f32 %v1495, 0.0
    %v1528 = vmax.f32 %v1496, 0.0
    %v1529 = vmax.f32 %v1497, 0.0
    %v1530 = vmax.f32 %v1498, 0.0
    %v1531 = vmax.f32 %v1499, 0.0
    %v1532 = vmax.f32 %v1500, 0.0
    %v1533 = vmax.f32 %v1501, 0.0
    %v1534 = vmax.f32 %v1502, 0.0
    %v1535 = vmax.f32 %v1503, 0.0
    %v1536 = vmax.f32 %v1504, 0.0
    %v1537 = vmax.f32 %v1505, 0.0
    %v1538 = vmax.f32 %v1506, 0.0
    %v1539 = vmax.f32 %v1507, 0.0
    %v1540 = vmax.f32 %v1508, 0.0
    %v1541 = vpack.c.bf16 %v1511, %v1509
    %v1542 = vpack.c.bf16 %v1512, %v1510
    %v1543 = vpack.c.bf16 %v1515, %v1513
    %v1544 = vpack.c.bf16 %v1516, %v1514
    %v1545 = vpack.c.bf16 %v1519, %v1517
    %v1546 = vpack.c.bf16 %v1520, %v1518
    %v1547 = vpack.c.bf16 %v1523, %v1521
    %v1548 = vpack.c.bf16 %v1524, %v1522
    %v1549 = vpack.c.bf16 %v1527, %v1525
    %v1550 = vpack.c.bf16 %v1528, %v1526
    %v1551 = vpack.c.bf16 %v1531, %v1529
    %v1552 = vpack.c.bf16 %v1532, %v1530
    %v1553 = vpack.c.bf16 %v1535, %v1533
    %v1554 = vpack.c.bf16 %v1536, %v1534
    %v1555 = vpack.c.bf16 %v1539, %v1537
    %v1556 = vpack.c.bf16 %v1540, %v1538
    %v1557 = vld [vmem:[#allocation8] sm:$0xf]
    %v1558 = vld [vmem:[#allocation8 + $0x4] sm:$0xf]
    %v1559 = vld [vmem:[#allocation8 + $0x8] sm:$0xf]
    %v1560 = vld [vmem:[#allocation8 + $0xc] sm:$0xf]
    %v1561 = vld [vmem:[#allocation8 + $0x10] sm:$0xf]
    %v1562 = vld [vmem:[#allocation8 + $0x14] sm:$0xf]
    %v1563 = vld [vmem:[#allocation8 + $0x18] sm:$0xf]
    %v1564 = vld [vmem:[#allocation8 + $0x1c] sm:$0xf]
    %v1565 = vld [vmem:[#allocation8 + $0x20] sm:$0xf]
    %v1566 = vld [vmem:[#allocation8 + $0x24] sm:$0xf]
    %v1567 = vld [vmem:[#allocation8 + $0x28] sm:$0xf]
    %v1568 = vld [vmem:[#allocation8 + $0x2c] sm:$0xf]
    %v1569 = vld [vmem:[#allocation8 + $0x30] sm:$0xf]
    %v1570 = vld [vmem:[#allocation8 + $0x34] sm:$0xf]
    %v1571 = vld [vmem:[#allocation8 + $0x38] sm:$0xf]
    %v1572 = vld [vmem:[#allocation8 + $0x3c] sm:$0xf]
    %v1573 = vld [vmem:[#allocation8 + $0x40] sm:$0xf]
    %v1574 = vld [vmem:[#allocation8 + $0x44] sm:$0xf]
    %v1575 = vld [vmem:[#allocation8 + $0x48] sm:$0xf]
    %v1576 = vld [vmem:[#allocation8 + $0x4c] sm:$0xf]
    %v1577 = vld [vmem:[#allocation8 + $0x50] sm:$0xf]
    %v1578 = vld [vmem:[#allocation8 + $0x54] sm:$0xf]
    %v1579 = vld [vmem:[#allocation8 + $0x58] sm:$0xf]
    %v1580 = vld [vmem:[#allocation8 + $0x5c] sm:$0xf]
    %v1581 = vld [vmem:[#allocation8 + $0x60] sm:$0xf]
    %v1582 = vld [vmem:[#allocation8 + $0x64] sm:$0xf]
    %v1583 = vld [vmem:[#allocation8 + $0x68] sm:$0xf]
    %v1584 = vld [vmem:[#allocation8 + $0x6c] sm:$0xf]
    %v1585 = vld [vmem:[#allocation8 + $0x70] sm:$0xf]
    %v1586 = vld [vmem:[#allocation8 + $0x74] sm:$0xf]
    %v1587 = vld [vmem:[#allocation8 + $0x78] sm:$0xf]
    %v1588 = vld [vmem:[#allocation8 + $0x7c] sm:$0xf]
    %v1589 = vlaneseq
    %v1590 = vshrl.u32 %v1589, 7
    %v1591 = vsub.s32 2, %v1590
    %v1592 = vrot.slane %v88, %v1591
    %v1625 = vunpack.c.l.b16 %v1557
    %v1626 = vunpack.c.l.b16 %v1558
    %v1627 = vunpack.c.l.b16 %v1559
    %v1628 = vunpack.c.l.b16 %v1560
    %v1629 = vunpack.c.l.b16 %v1561
    %v1630 = vunpack.c.l.b16 %v1562
    %v1631 = vunpack.c.l.b16 %v1563
    %v1632 = vunpack.c.l.b16 %v1564
    %v1633 = vunpack.c.l.b16 %v1565
    %v1634 = vunpack.c.l.b16 %v1566
    %v1635 = vunpack.c.l.b16 %v1567
    %v1636 = vunpack.c.l.b16 %v1568
    %v1637 = vunpack.c.l.b16 %v1569
    %v1638 = vunpack.c.l.b16 %v1570
    %v1639 = vunpack.c.l.b16 %v1571
    %v1640 = vunpack.c.l.b16 %v1572
    %v1641 = vunpack.c.l.b16 %v1573
    %v1642 = vunpack.c.l.b16 %v1574
    %v1643 = vunpack.c.l.b16 %v1575
    %v1644 = vunpack.c.l.b16 %v1576
    %v1645 = vunpack.c.l.b16 %v1577
    %v1646 = vunpack.c.l.b16 %v1578
    %v1647 = vunpack.c.l.b16 %v1579
    %v1648 = vunpack.c.l.b16 %v1580
    %v1649 = vunpack.c.l.b16 %v1581
    %v1650 = vunpack.c.l.b16 %v1582
    %v1651 = vunpack.c.l.b16 %v1583
    %v1652 = vunpack.c.l.b16 %v1584
    %v1653 = vunpack.c.l.b16 %v1585
    %v1654 = vunpack.c.l.b16 %v1586
    %v1655 = vunpack.c.l.b16 %v1587
    %v1656 = vunpack.c.l.b16 %v1588
    %v1657 = vpack.c.b16 %v1626, %v1625
    %v1658 = vpack.c.b16 %v1628, %v1627
    %v1659 = vpack.c.b16 %v1630, %v1629
    %v1660 = vpack.c.b16 %v1632, %v1631
    %v1661 = vpack.c.b16 %v1634, %v1633
    %v1662 = vpack.c.b16 %v1636, %v1635
    %v1663 = vpack.c.b16 %v1638, %v1637
    %v1664 = vpack.c.b16 %v1640, %v1639
    %v1665 = vpack.c.b16 %v1642, %v1641
    %v1666 = vpack.c.b16 %v1644, %v1643
    %v1667 = vpack.c.b16 %v1646, %v1645
    %v1668 = vpack.c.b16 %v1648, %v1647
    %v1669 = vpack.c.b16 %v1650, %v1649
    %v1670 = vpack.c.b16 %v1652, %v1651
    %v1671 = vpack.c.b16 %v1654, %v1653
    %v1672 = vpack.c.b16 %v1656, %v1655
    %1689 = vmatprep.subr.bf16.mxu0 0
    %1690 = vmatpush1.bf16.msra.mxu0 %v1664
    %1691 = vmatprep.subr.bf16.mxu0 0
    %1692 = vmatpush1.bf16.msra.mxu0 %v1663
    %1693 = vmatprep.subr.bf16.mxu0 0
    %1694 = vmatpush1.bf16.msra.mxu0 %v1662
    %1695 = vmatprep.subr.bf16.mxu0 0
    %1696 = vmatpush1.bf16.msra.mxu0 %v1661
    %1697 = vmatprep.subr.bf16.mxu0 0
    %1698 = vmatpush1.bf16.msra.mxu0 %v1660
    %1699 = vmatprep.subr.bf16.mxu0 0
    %1700 = vmatpush1.bf16.msra.mxu0 %v1659
    %1701 = vmatprep.subr.bf16.mxu0 0
    %1702 = vmatpush1.bf16.msra.mxu0 %v1658
    %1703 = vmatprep.subr.bf16.mxu0 0
    %1704 = vmatpush1.bf16.msra.mxu0 %v1657
    %1705 = vmatprep.subr.bf16.mxu0 0
    %1706 = vmatpush2.bf16.msra.mxu0 %v1672
    %1707 = vmatprep.subr.bf16.mxu0 0
    %1708 = vmatpush2.bf16.msra.mxu0 %v1671
    %1709 = vmatprep.subr.bf16.mxu0 0
    %1710 = vmatpush2.bf16.msra.mxu0 %v1670
    %1711 = vmatprep.subr.bf16.mxu0 0
    %1712 = vmatpush2.bf16.msra.mxu0 %v1669
    %1713 = vmatprep.subr.bf16.mxu0 0
    %1714 = vmatpush2.bf16.msra.mxu0 %v1668
    %1715 = vmatprep.subr.bf16.mxu0 0
    %1716 = vmatpush2.bf16.msra.mxu0 %v1667
    %1717 = vmatprep.subr.bf16.mxu0 0
    %1718 = vmatpush2.bf16.msra.mxu0 %v1666
    %1719 = vmatprep.subr.bf16.mxu0 0
    %1720 = vmatpush2.bf16.msra.mxu0 %v1665
    %1721 = vmatprep.mubr.bf16.mxu0 %v1542
    %1722 = vmatmul.mubr.bf16.gmra.mxu0 %v1541
    %v1723 = vpop.f32.mrf.mxu0
    %v1724 = vadd.f32 %v1592, %v1723
    %v1725 = vpop.f32.mrf.mxu0
    %v1726 = vpop.f32.mrf.mxu0
    %v1727 = vadd.f32 %v1592, %v1726
    %v1728 = vpop.f32.mrf.mxu0
    %1729 = vmatprep.mubr.bf16.mxu0 %v1544
    %1730 = vmatmul.mubr.bf16.gmra.mxu0 %v1543
    %v1731 = vpop.f32.mrf.mxu0
    %v1732 = vadd.f32 %v1592, %v1731
    %v1733 = vpop.f32.mrf.mxu0
    %v1734 = vpop.f32.mrf.mxu0
    %v1735 = vadd.f32 %v1592, %v1734
    %v1736 = vpop.f32.mrf.mxu0
    %1737 = vmatprep.mubr.bf16.mxu0 %v1546
    %1738 = vmatmul.mubr.bf16.gmra.mxu0 %v1545
    %v1739 = vpop.f32.mrf.mxu0
    %v1740 = vadd.f32 %v1592, %v1739
    %v1741 = vpop.f32.mrf.mxu0
    %v1742 = vpop.f32.mrf.mxu0
    %v1743 = vadd.f32 %v1592, %v1742
    %v1744 = vpop.f32.mrf.mxu0
    %1745 = vmatprep.mubr.bf16.mxu0 %v1548
    %1746 = vmatmul.mubr.bf16.gmra.mxu0 %v1547
    %v1747 = vpop.f32.mrf.mxu0
    %v1748 = vadd.f32 %v1592, %v1747
    %v1749 = vpop.f32.mrf.mxu0
    %v1750 = vpop.f32.mrf.mxu0
    %v1751 = vadd.f32 %v1592, %v1750
    %v1752 = vpop.f32.mrf.mxu0
    %1753 = vmatprep.mubr.bf16.mxu0 %v1550
    %1754 = vmatmul.mubr.bf16.gmra.mxu0 %v1549
    %v1755 = vpop.f32.mrf.mxu0
    %v1756 = vadd.f32 %v1592, %v1755
    %v1757 = vpop.f32.mrf.mxu0
    %v1758 = vpop.f32.mrf.mxu0
    %v1759 = vadd.f32 %v1592, %v1758
    %v1760 = vpop.f32.mrf.mxu0
    %1761 = vmatprep.mubr.bf16.mxu0 %v1552
    %1762 = vmatmul.mubr.bf16.gmra.mxu0 %v1551
    %v1763 = vpop.f32.mrf.mxu0
    %v1764 = vadd.f32 %v1592, %v1763
    %v1765 = vpop.f32.mrf.mxu0
    %v1766 = vpop.f32.mrf.mxu0
    %v1767 = vadd.f32 %v1592, %v1766
    %v1768 = vpop.f32.mrf.mxu0
    %1769 = vmatprep.mubr.bf16.mxu0 %v1554
    %1770 = vmatmul.mubr.bf16.gmra.mxu0 %v1553
    %v1771 = vpop.f32.mrf.mxu0
    %v1772 = vadd.f32 %v1592, %v1771
    %v1773 = vpop.f32.mrf.mxu0
    %v1774 = vpop.f32.mrf.mxu0
    %v1775 = vadd.f32 %v1592, %v1774
    %v1776 = vpop.f32.mrf.mxu0
    %1777 = vmatprep.mubr.bf16.mxu0 %v1556
    %1778 = vmatmul.mubr.bf16.gmra.mxu0 %v1555
    %v1779 = vpop.f32.mrf.mxu0
    %v1780 = vadd.f32 %v1592, %v1779
    %v1781 = vpop.f32.mrf.mxu0
    %v1782 = vpop.f32.mrf.mxu0
    %v1783 = vadd.f32 %v1592, %v1782
    %v1784 = vpop.f32.mrf.mxu0
    %1785 = vdwg.mxu0
    %1786 = vst [vmem:[#allocation11] sm:$0xff] %v1724
    %1787 = vst [vmem:[#allocation11 + $0x8] sm:$0xff] %v1727
    %1788 = vst [vmem:[#allocation11 + $0x10] sm:$0xff] %v1732
    %1789 = vst [vmem:[#allocation11 + $0x18] sm:$0xff] %v1735
    %1790 = vst [vmem:[#allocation11 + $0x20] sm:$0xff] %v1740
    %1791 = vst [vmem:[#allocation11 + $0x28] sm:$0xff] %v1743
    %1792 = vst [vmem:[#allocation11 + $0x30] sm:$0xff] %v1748
    %1793 = vst [vmem:[#allocation11 + $0x38] sm:$0xff] %v1751
    %1794 = vst [vmem:[#allocation11 + $0x40] sm:$0xff] %v1756
    %1795 = vst [vmem:[#allocation11 + $0x48] sm:$0xff] %v1759
    %1796 = vst [vmem:[#allocation11 + $0x50] sm:$0xff] %v1764
    %1797 = vst [vmem:[#allocation11 + $0x58] sm:$0xff] %v1767
    %1798 = vst [vmem:[#allocation11 + $0x60] sm:$0xff] %v1772
    %1799 = vst [vmem:[#allocation11 + $0x68] sm:$0xff] %v1775
    %1800 = vst [vmem:[#allocation11 + $0x70] sm:$0xff] %v1780
    %1801 = vst [vmem:[#allocation11 + $0x78] sm:$0xff] %v1783
    // Predicated region
    $region42: #{tpu_custom_call.1} parent=1 // pred_check
      _
    $region43: #{tpu_custom_call.1} parent=1 // pred_check_branch
      %1803 = sbr.rel (0) target = $region45
    $region44: #{tpu_custom_call.1} parent=1 // pred_region
      %s1805 = ssub.s32 2048, 2048
      %1806 = vsyncadd [#allocation4], %s1805
      %s1807 = sshll.u32 [#allocation11], 4
      %s1808 = int_to_ptr.vmem [resolvable:$true] %s1807
      %1813 = dma.vmem_to_hbm [thread:$0]  %s1808, 2048, %s5, [#allocation4], 128, 128, 8
    $region45: #{tpu_custom_call.1} parent=1 // pred_fallthru
      _
    // Predicated region
    $region46: #{tpu_custom_call.1} parent=1 // pred_check
      _
    $region47: #{tpu_custom_call.1} parent=1 // pred_check_branch
      %1815 = sbr.rel (0) target = $region49
    $region48: #{tpu_custom_call.1} parent=1 // pred_region
      %1816 = dma.done [#allocation4], 2048
    $region49: #{tpu_custom_call.1} parent=1 // pred_fallthru
      _
    %1817 = vsyncpa [#allocation3], 1
    %1818 = vsyncpa [#allocation6], 1
    %1819 = vsyncpa [#allocation9], 1
    %1820 = vsyncpa [#allocation4], 1

</llo_original>
